<compile_context>
chip_gen: v6e
topology: v6e:2x2x1
jax: 0.10.0
libtpu: 0.0.40
codegen_flags: <defaults>
</compile_context>

<pallas_src>
import functools

import jax
import jax.numpy as jnp
from jax.experimental import pallas as pl
from jax.experimental.pallas import tpu as pltpu

# Above v5e's 16 MiB scoped default, within v6e/v7x budgets.
VMEM_LIMIT_BYTES = 32 * 1024 * 1024


# ----------------------------- small helpers --------------------------------

def _round_up(x: int, m: int) -> int:
    return ((x + m - 1) // m) * m


def _pick(dim: int, target: int, base: int):
    """Block size (multiple of `base`, <= target) and the padded dim it divides."""
    blk = min(_round_up(target, base), _round_up(dim, base))
    return blk, _round_up(dim, blk)


def _pad2d(a, rows: int, cols: int):
    r, c = a.shape
    if r == rows and c == cols:
        return a
    return jnp.pad(a, ((0, rows - r), (0, cols - c)))


def _compiler_params():
    return pltpu.CompilerParams(
        dimension_semantics=("parallel", "parallel", "arbitrary"),
        vmem_limit_bytes=VMEM_LIMIT_BYTES,
    )


# ------------------------------- kernels ------------------------------------

def _linear_bias_kernel(x_ref, w_ref, b_ref, o_ref, acc_ref):
    """O = X @ W + b, bias fused in the finalize epilogue."""
    k = pl.program_id(2)

    @pl.when(k == 0)
    def _():
        acc_ref[...] = jnp.zeros_like(acc_ref)

    acc_ref[...] += jnp.dot(x_ref[...], w_ref[...],
                            preferred_element_type=jnp.float32)

    @pl.when(k == pl.num_programs(2) - 1)
    def _():
        o_ref[...] = (acc_ref[...] + b_ref[...]).astype(o_ref.dtype)


def _v2e_mean_kernel(ht_ref, t_ref, scale_ref, y_ref, acc_ref):
    """Y = (H^T @ T) * D_e^{-1}  (mean aggregation; normalisation fused)."""
    k = pl.program_id(2)

    @pl.when(k == 0)
    def _():
        acc_ref[...] = jnp.zeros_like(acc_ref)

    acc_ref[...] += jnp.dot(ht_ref[...], t_ref[...],
                            preferred_element_type=jnp.float32)

    @pl.when(k == pl.num_programs(2) - 1)
    def _():
        y_ref[...] = (acc_ref[...] * scale_ref[...]).astype(y_ref.dtype)


def _e2v_residual_kernel(h_ref, y_ref, t_ref, o_ref, acc_ref, *, apply_relu):
    """O = (relu?)(T + H @ Y)  (sum aggregation; residual + ReLU fused)."""
    k = pl.program_id(2)

    @pl.when(k == 0)
    def _():
        acc_ref[...] = jnp.zeros_like(acc_ref)

    acc_ref[...] += jnp.dot(h_ref[...], y_ref[...],
                            preferred_element_type=jnp.float32)

    @pl.when(k == pl.num_programs(2) - 1)
    def _():
        out = acc_ref[...] + t_ref[...].astype(jnp.float32)
        if apply_relu:
            out = jnp.maximum(out, 0.0)
        o_ref[...] = out.astype(o_ref.dtype)


# ------------------------------ wrappers -------------------------------------

def pallas_linear(x, w, b, *, out_dtype=jnp.bfloat16,
                  tile_m=256, tile_k=512, tile_n=256):
    """theta linear: x @ w + b with bf16 operands / f32 accumulation."""
    m, kd = x.shape
    kd2, n = w.shape
    assert kd == kd2
    bm, m_pad = _pick(m, tile_m, 8)
    bk, k_pad = _pick(kd, tile_k, 128)
    bn, n_pad = _pick(n, tile_n, 128)

    xp = _pad2d(x.astype(jnp.bfloat16), m_pad, k_pad)
    wp = _pad2d(w.astype(jnp.bfloat16), k_pad, n_pad)
    bp = _pad2d(b.reshape(1, -1).astype(jnp.float32), 1, n_pad)

    out = pl.pallas_call(
        _linear_bias_kernel,
        out_shape=jax.ShapeDtypeStruct((m_pad, n_pad), out_dtype),
        grid_spec=pltpu.PrefetchScalarGridSpec(
            num_scalar_prefetch=0,
            grid=(m_pad // bm, n_pad // bn, k_pad // bk),
            in_specs=[
                pl.BlockSpec((bm, bk), lambda i, j, k: (i, k)),
                pl.BlockSpec((bk, bn), lambda i, j, k: (k, j)),
                pl.BlockSpec((1, bn), lambda i, j, k: (0, j)),
            ],
            out_specs=pl.BlockSpec((bm, bn), lambda i, j, k: (i, j)),
            scratch_shapes=[pltpu.VMEM((bm, bn), jnp.float32)],
        ),
        compiler_params=_compiler_params(),
    )(xp, wp, bp)
    return out[:m, :n]


def pallas_unisage_prop(t, h, ht, inv_de, *, apply_relu, out_dtype,
                        tile_nodes=512, tile_edges=512, tile_cols=256):
    """O = (relu?)(T + H @ (D_e^{-1} (H^T @ T)));  T:[N,C], H:[N,E] 0/1 incidence."""
    n, c = t.shape
    n2, e = h.shape
    assert n == n2 and ht.shape == (e, n)

    bv, n_pad = _pick(n, tile_nodes, 128)   # nodes: contraction in v2e, rows in e2v
    be, e_pad = _pick(e, tile_edges, 128)   # edges: rows in v2e, contraction in e2v
    bc, c_pad = _pick(c, tile_cols, 128)    # channels: lane axis everywhere

    tp = _pad2d(t.astype(jnp.bfloat16), n_pad, c_pad)
    hp = _pad2d(h.astype(jnp.bfloat16), n_pad, e_pad)
    htp = _pad2d(ht.astype(jnp.bfloat16), e_pad, n_pad)
    sp = _pad2d(inv_de.reshape(-1, 1).astype(jnp.float32), e_pad, 1)

    # v2e (aggr="mean"): Y = (H^T @ T) * D_e^{-1}, normalisation fused in epilogue.
    y = pl.pallas_call(
        _v2e_mean_kernel,
        out_shape=jax.ShapeDtypeStruct((e_pad, c_pad), jnp.bfloat16),
        grid_spec=pltpu.PrefetchScalarGridSpec(
            num_scalar_prefetch=0,
            grid=(e_pad // be, c_pad // bc, n_pad // bv),
            in_specs=[
                pl.BlockSpec((be, bv), lambda i, j, k: (i, k)),
                pl.BlockSpec((bv, bc), lambda i, j, k: (k, j)),
                pl.BlockSpec((be, 1), lambda i, j, k: (i, 0)),
            ],
            out_specs=pl.BlockSpec((be, bc), lambda i, j, k: (i, j)),
            scratch_shapes=[pltpu.VMEM((be, bc), jnp.float32)],
        ),
        compiler_params=_compiler_params(),
    )(htp, tp, sp)

    # e2v (aggr="sum") + residual + optional ReLU fused in the epilogue.
    out = pl.pallas_call(
        functools.partial(_e2v_residual_kernel, apply_relu=apply_relu),
        out_shape=jax.ShapeDtypeStruct((n_pad, c_pad), out_dtype),
        grid_spec=pltpu.PrefetchScalarGridSpec(
            num_scalar_prefetch=0,
            grid=(n_pad // bv, c_pad // bc, e_pad // be),
            in_specs=[
                pl.BlockSpec((bv, be), lambda i, j, k: (i, k)),
                pl.BlockSpec((be, bc), lambda i, j, k: (k, j)),
                pl.BlockSpec((bv, bc), lambda i, j, k: (i, j)),
            ],
            out_specs=pl.BlockSpec((bv, bc), lambda i, j, k: (i, j)),
            scratch_shapes=[pltpu.VMEM((bv, bc), jnp.float32)],
        ),
        compiler_params=_compiler_params(),
    )(hp, y, tp)

    return out[:n, :c]


# ------------------------------ LAUniSAGE ------------------------------------

def la_unisage_forward(x_list, H, params):
    """Eval-mode forward of LAUniSAGE (use_bn=False, dropout = identity)."""
    W1, b1 = params["W1"], params["b1"]
    W2, b2 = params["W2"], params["b2"]

    de = jnp.sum(H, axis=0)                                      # hyperedge degrees
    inv_de = jnp.where(de > 0, 1.0 / jnp.maximum(de, 1.0), 0.0)  # guard empty edges
    Ht = H.T

    # ---- layer 1: shared theta per view, ONE propagation on the wide concat ----
    theta = [pallas_linear(x, W1, b1) for x in x_list]
    T = jnp.concatenate(theta, axis=-1)                          # [N, K*hid], lane-dense
    Z = pallas_unisage_prop(T, H, Ht, inv_de,
                            apply_relu=True, out_dtype=jnp.bfloat16)
    # TODO(synk): training-mode dropout / use_bn BatchNorm not implemented (eval = identity).

    # ---- layer 2 (is_last: no activation) ----
    T2 = pallas_linear(Z, W2, b2)
    out = pallas_unisage_prop(T2, H, Ht, inv_de,
                              apply_relu=False, out_dtype=jnp.float32)
    return out


# ------------------------------ reference ------------------------------------

def _reference_forward(x_list, H, params):
    de = jnp.sum(H, axis=0)
    inv_de = jnp.where(de > 0, 1.0 / jnp.maximum(de, 1.0), 0.0)

    def unisage(x, W, b, relu):
        t = x @ W + b
        y = (H.T @ t) * inv_de[:, None]
        o = t + H @ y
        return jnp.maximum(o, 0.0) if relu else o

    hidden = [unisage(x, params["W1"], params["b1"], True) for x in x_list]
    z = jnp.concatenate(hidden, axis=-1)
    return unisage(z, params["W2"], params["b2"], False)


# --------------------------------- main ---------------------------------------

if __name__ == "__main__":
    key = jax.random.PRNGKey(0)
    k_x0, k_x1, k_h, k_w1, k_b1, k_w2, k_b2 = jax.random.split(key, 7)

    concat = 2              # number of views
    N, E = 64, 16           # vertices, hyperedges
    in_ch, hid, n_cls = 16, 32, 4

    x_list = [
        jax.random.normal(k_x0, (N, in_ch), jnp.float32),
        jax.random.normal(k_x1, (N, in_ch), jnp.float32),
    ]
    H = (jax.random.uniform(k_h, (N, E)) < 0.2).astype(jnp.float32)  # 0/1 incidence

    params = {
        "W1": jax.random.normal(k_w1, (in_ch, hid), jnp.float32) / jnp.sqrt(in_ch),
        "b1": 0.1 * jax.random.normal(k_b1, (hid,), jnp.float32),
        "W2": jax.random.normal(k_w2, (concat * hid, n_cls), jnp.float32)
              / jnp.sqrt(concat * hid),
        "b2": 0.1 * jax.random.normal(k_b2, (n_cls,), jnp.float32),
    }

    fwd = jax.jit(la_unisage_forward)
    out = jax.block_until_ready(fwd(x_list, H, params))
    assert out.shape == (N, n_cls) and out.dtype == jnp.float32

    ref = jax.block_until_ready(_reference_forward(x_list, H, params))
    rel_err = float(jnp.max(jnp.abs(out - ref)) / (jnp.max(jnp.abs(ref)) + 1e-6))
    assert rel_err < 8e-2, f"mismatch vs f32 reference: rel_err={rel_err}"

    print("KERNEL_OK")
</pallas_src>

<mosaic_0001>
module attributes {stable_mosaic.version = 11 : i64} {
  func.func @_linear_bias_kernel(%arg0: i32, %arg1: i32, %arg2: i32, %arg3: memref<64x128xbf16, #tpu.memory_space<vmem>>, %arg4: memref<128x128xbf16, #tpu.memory_space<vmem>>, %arg5: memref<1x128xf32, #tpu.memory_space<vmem>>, %arg6: memref<64x128xbf16, #tpu.memory_space<vmem>>, %arg7: memref<64x128xf32, #tpu.memory_space<vmem>>) attributes {dimension_semantics = [#tpu.dimension_semantics<parallel>, #tpu.dimension_semantics<parallel>, #tpu.dimension_semantics<arbitrary>], iteration_bounds = array<i64: 1, 1, 1>, scalar_prefetch = 0 : i64, scratch_operands = 1 : i64, tpu.core_type = #tpu.core_type<tc>, window_params = [{transform_indices = @transform_0, window_bounds = array<i64: 64, 128>}, {transform_indices = @transform_1, window_bounds = array<i64: 128, 128>}, {transform_indices = @transform_2, window_bounds = array<i64: 1, 128>}, {transform_indices = @transform_3, window_bounds = array<i64: 64, 128>}]} {
    %c0_i32 = arith.constant 0 : i32
    %0 = arith.cmpi eq, %arg2, %c0_i32 : i32
    %1 = arith.extui %0 : i1 to i32
    %c0_i32_0 = arith.constant 0 : i32
    %2 = arith.cmpi ne, %1, %c0_i32_0 : i32
    scf.if %2 {
      %cst_10 = arith.constant 0.000000e+00 : f32
      %12 = vector.broadcast %cst_10 : f32 to vector<64x128xf32>
      %c0_11 = arith.constant 0 : index
      %c0_12 = arith.constant 0 : index
      %13 = vector.load %arg7[%c0_11, %c0_12] : memref<64x128xf32, #tpu.memory_space<vmem>>, vector<64x128xf32>
      tpu.vector_store %arg7[%c0_11, %c0_12], %12 {strides = array<i32>} : memref<64x128xf32, #tpu.memory_space<vmem>>, vector<64x128xf32>,
    } else {
    }
    %c0 = arith.constant 0 : index
    %c0_1 = arith.constant 0 : index
    %3 = vector.load %arg7[%c0, %c0_1] : memref<64x128xf32, #tpu.memory_space<vmem>>, vector<64x128xf32>
    %c0_2 = arith.constant 0 : index
    %c0_3 = arith.constant 0 : index
    %4 = vector.load %arg3[%c0_2, %c0_3] : memref<64x128xbf16, #tpu.memory_space<vmem>>, vector<64x128xbf16>
    %c0_4 = arith.constant 0 : index
    %c0_5 = arith.constant 0 : index
    %5 = vector.load %arg4[%c0_4, %c0_5] : memref<128x128xbf16, #tpu.memory_space<vmem>>, vector<128x128xbf16>
    %cst = arith.constant dense<0.000000e+00> : vector<64x128xf32>
    %6 = tpu.matmul %4, %5, %cst {dimension_numbers = #tpu.dot_dimension_numbers<[1], [0], [0], [1], [0, 0, 1, 1], [], []>} : vector<64x128xbf16>, vector<128x128xbf16>, vector<64x128xf32> -> vector<64x128xf32>
    %7 = arith.addf %3, %6 : vector<64x128xf32>
    %c0_6 = arith.constant 0 : index
    %c0_7 = arith.constant 0 : index
    %8 = vector.load %arg7[%c0_6, %c0_7] : memref<64x128xf32, #tpu.memory_space<vmem>>, vector<64x128xf32>
    tpu.vector_store %arg7[%c0_6, %c0_7], %7 {strides = array<i32>} : memref<64x128xf32, #tpu.memory_space<vmem>>, vector<64x128xf32>,
    %c0_i32_8 = arith.constant 0 : i32
    %9 = arith.cmpi eq, %arg2, %c0_i32_8 : i32
    %10 = arith.extui %9 : i1 to i32
    %c0_i32_9 = arith.constant 0 : i32
    %11 = arith.cmpi ne, %10, %c0_i32_9 : i32
    scf.if %11 {
      %c0_10 = arith.constant 0 : index
      %c0_11 = arith.constant 0 : index
      %12 = vector.load %arg7[%c0_10, %c0_11] : memref<64x128xf32, #tpu.memory_space<vmem>>, vector<64x128xf32>
      %c0_12 = arith.constant 0 : index
      %c0_13 = arith.constant 0 : index
      %13 = vector.load %arg5[%c0_12, %c0_13] : memref<1x128xf32, #tpu.memory_space<vmem>>, vector<1x128xf32>
      %14 = vector.broadcast %13 : vector<1x128xf32> to vector<64x128xf32>
      %15 = arith.addf %12, %14 : vector<64x128xf32>
      %16 = arith.truncf %15 : vector<64x128xf32> to vector<64x128xbf16>
      %c0_14 = arith.constant 0 : index
      %c0_15 = arith.constant 0 : index
      %17 = vector.load %arg6[%c0_14, %c0_15] : memref<64x128xbf16, #tpu.memory_space<vmem>>, vector<64x128xbf16>
      tpu.vector_store %arg6[%c0_14, %c0_15], %16 {strides = array<i32>} : memref<64x128xbf16, #tpu.memory_space<vmem>>, vector<64x128xbf16>,
    } else {
    }
    return
  }
  func.func @transform_0(%arg0: i32, %arg1: i32, %arg2: i32) -> (i32, i32) {
    %c0_i32 = arith.constant 0 : i32
    return %arg0, %arg2 : i32, i32
  }
  func.func @transform_1(%arg0: i32, %arg1: i32, %arg2: i32) -> (i32, i32) {
    %c0_i32 = arith.constant 0 : i32
    return %arg2, %arg1 : i32, i32
  }
  func.func @transform_2(%arg0: i32, %arg1: i32, %arg2: i32) -> (i32, i32) {
    %c0_i32 = arith.constant 0 : i32
    %c0_i32_0 = arith.constant 0 : i32
    return %c0_i32, %arg1 : i32, i32
  }
  func.func @transform_3(%arg0: i32, %arg1: i32, %arg2: i32) -> (i32, i32) {
    %c0_i32 = arith.constant 0 : i32
    return %arg0, %arg1 : i32, i32
  }
}

module attributes {stable_mosaic.version = 11 : i64} {
  func.func @_v2e_mean_kernel(%arg0: i32, %arg1: i32, %arg2: i32, %arg3: memref<128x128xbf16, #tpu.memory_space<vmem>>, %arg4: memref<128x128xbf16, #tpu.memory_space<vmem>>, %arg5: memref<128x1xf32, #tpu.memory_space<vmem>>, %arg6: memref<128x128xbf16, #tpu.memory_space<vmem>>, %arg7: memref<128x128xf32, #tpu.memory_space<vmem>>) attributes {dimension_semantics = [#tpu.dimension_semantics<parallel>, #tpu.dimension_semantics<parallel>, #tpu.dimension_semantics<arbitrary>], iteration_bounds = array<i64: 1, 1, 1>, scalar_prefetch = 0 : i64, scratch_operands = 1 : i64, tpu.core_type = #tpu.core_type<tc>, window_params = [{transform_indices = @transform_0, window_bounds = array<i64: 128, 128>}, {transform_indices = @transform_1, window_bounds = array<i64: 128, 128>}, {transform_indices = @transform_2, window_bounds = array<i64: 128, 1>}, {transform_indices = @transform_3, window_bounds = array<i64: 128, 128>}]} {
    %c0_i32 = arith.constant 0 : i32
    %0 = arith.cmpi eq, %arg2, %c0_i32 : i32
    %1 = arith.extui %0 : i1 to i32
    %c0_i32_0 = arith.constant 0 : i32
    %2 = arith.cmpi ne, %1, %c0_i32_0 : i32
    scf.if %2 {
      %cst_10 = arith.constant 0.000000e+00 : f32
      %12 = vector.broadcast %cst_10 : f32 to vector<128x128xf32>
      %c0_11 = arith.constant 0 : index
      %c0_12 = arith.constant 0 : index
      %13 = vector.load %arg7[%c0_11, %c0_12] : memref<128x128xf32, #tpu.memory_space<vmem>>, vector<128x128xf32>
      tpu.vector_store %arg7[%c0_11, %c0_12], %12 {strides = array<i32>} : memref<128x128xf32, #tpu.memory_space<vmem>>, vector<128x128xf32>,
    } else {
    }
    %c0 = arith.constant 0 : index
    %c0_1 = arith.constant 0 : index
    %3 = vector.load %arg7[%c0, %c0_1] : memref<128x128xf32, #tpu.memory_space<vmem>>, vector<128x128xf32>
    %c0_2 = arith.constant 0 : index
    %c0_3 = arith.constant 0 : index
    %4 = vector.load %arg3[%c0_2, %c0_3] : memref<128x128xbf16, #tpu.memory_space<vmem>>, vector<128x128xbf16>
    %c0_4 = arith.constant 0 : index
    %c0_5 = arith.constant 0 : index
    %5 = vector.load %arg4[%c0_4, %c0_5] : memref<128x128xbf16, #tpu.memory_space<vmem>>, vector<128x128xbf16>
    %cst = arith.constant dense<0.000000e+00> : vector<128x128xf32>
    %6 = tpu.matmul %4, %5, %cst {dimension_numbers = #tpu.dot_dimension_numbers<[1], [0], [0], [1], [0, 0, 1, 1], [], []>} : vector<128x128xbf16>, vector<128x128xbf16>, vector<128x128xf32> -> vector<128x128xf32>
    %7 = arith.addf %3, %6 : vector<128x128xf32>
    %c0_6 = arith.constant 0 : index
    %c0_7 = arith.constant 0 : index
    %8 = vector.load %arg7[%c0_6, %c0_7] : memref<128x128xf32, #tpu.memory_space<vmem>>, vector<128x128xf32>
    tpu.vector_store %arg7[%c0_6, %c0_7], %7 {strides = array<i32>} : memref<128x128xf32, #tpu.memory_space<vmem>>, vector<128x128xf32>,
    %c0_i32_8 = arith.constant 0 : i32
    %9 = arith.cmpi eq, %arg2, %c0_i32_8 : i32
    %10 = arith.extui %9 : i1 to i32
    %c0_i32_9 = arith.constant 0 : i32
    %11 = arith.cmpi ne, %10, %c0_i32_9 : i32
    scf.if %11 {
      %c0_10 = arith.constant 0 : index
      %c0_11 = arith.constant 0 : index
      %12 = vector.load %arg7[%c0_10, %c0_11] : memref<128x128xf32, #tpu.memory_space<vmem>>, vector<128x128xf32>
      %c0_12 = arith.constant 0 : index
      %c0_13 = arith.constant 0 : index
      %13 = vector.load %arg5[%c0_12, %c0_13] : memref<128x1xf32, #tpu.memory_space<vmem>>, vector<128x1xf32>
      %14 = vector.broadcast %13 : vector<128x1xf32> to vector<128x128xf32>
      %15 = arith.mulf %12, %14 : vector<128x128xf32>
      %16 = arith.truncf %15 : vector<128x128xf32> to vector<128x128xbf16>
      %c0_14 = arith.constant 0 : index
      %c0_15 = arith.constant 0 : index
      %17 = vector.load %arg6[%c0_14, %c0_15] : memref<128x128xbf16, #tpu.memory_space<vmem>>, vector<128x128xbf16>
      tpu.vector_store %arg6[%c0_14, %c0_15], %16 {strides = array<i32>} : memref<128x128xbf16, #tpu.memory_space<vmem>>, vector<128x128xbf16>,
    } else {
    }
    return
  }
  func.func @transform_0(%arg0: i32, %arg1: i32, %arg2: i32) -> (i32, i32) {
    %c0_i32 = arith.constant 0 : i32
    return %arg0, %arg2 : i32, i32
  }
  func.func @transform_1(%arg0: i32, %arg1: i32, %arg2: i32) -> (i32, i32) {
    %c0_i32 = arith.constant 0 : i32
    return %arg2, %arg1 : i32, i32
  }
  func.func @transform_2(%arg0: i32, %arg1: i32, %arg2: i32) -> (i32, i32) {
    %c0_i32 = arith.constant 0 : i32
    %c0_i32_0 = arith.constant 0 : i32
    return %arg0, %c0_i32 : i32, i32
  }
  func.func @transform_3(%arg0: i32, %arg1: i32, %arg2: i32) -> (i32, i32) {
    %c0_i32 = arith.constant 0 : i32
    return %arg0, %arg1 : i32, i32
  }
}

module attributes {stable_mosaic.version = 11 : i64} {
  func.func @_e2v_residual_kernel(%arg0: i32, %arg1: i32, %arg2: i32, %arg3: memref<128x128xbf16, #tpu.memory_space<vmem>>, %arg4: memref<128x128xbf16, #tpu.memory_space<vmem>>, %arg5: memref<128x128xbf16, #tpu.memory_space<vmem>>, %arg6: memref<128x128xbf16, #tpu.memory_space<vmem>>, %arg7: memref<128x128xf32, #tpu.memory_space<vmem>>) attributes {dimension_semantics = [#tpu.dimension_semantics<parallel>, #tpu.dimension_semantics<parallel>, #tpu.dimension_semantics<arbitrary>], iteration_bounds = array<i64: 1, 1, 1>, scalar_prefetch = 0 : i64, scratch_operands = 1 : i64, tpu.core_type = #tpu.core_type<tc>, window_params = [{transform_indices = @transform_0, window_bounds = array<i64: 128, 128>}, {transform_indices = @transform_1, window_bounds = array<i64: 128, 128>}, {transform_indices = @transform_2, window_bounds = array<i64: 128, 128>}, {transform_indices = @transform_3, window_bounds = array<i64: 128, 128>}]} {
    %c0_i32 = arith.constant 0 : i32
    %0 = arith.cmpi eq, %arg2, %c0_i32 : i32
    %1 = arith.extui %0 : i1 to i32
    %c0_i32_0 = arith.constant 0 : i32
    %2 = arith.cmpi ne, %1, %c0_i32_0 : i32
    scf.if %2 {
      %cst_10 = arith.constant 0.000000e+00 : f32
      %12 = vector.broadcast %cst_10 : f32 to vector<128x128xf32>
      %c0_11 = arith.constant 0 : index
      %c0_12 = arith.constant 0 : index
      %13 = vector.load %arg7[%c0_11, %c0_12] : memref<128x128xf32, #tpu.memory_space<vmem>>, vector<128x128xf32>
      tpu.vector_store %arg7[%c0_11, %c0_12], %12 {strides = array<i32>} : memref<128x128xf32, #tpu.memory_space<vmem>>, vector<128x128xf32>,
    } else {
    }
    %c0 = arith.constant 0 : index
    %c0_1 = arith.constant 0 : index
    %3 = vector.load %arg7[%c0, %c0_1] : memref<128x128xf32, #tpu.memory_space<vmem>>, vector<128x128xf32>
    %c0_2 = arith.constant 0 : index
    %c0_3 = arith.constant 0 : index
    %4 = vector.load %arg3[%c0_2, %c0_3] : memref<128x128xbf16, #tpu.memory_space<vmem>>, vector<128x128xbf16>
    %c0_4 = arith.constant 0 : index
    %c0_5 = arith.constant 0 : index
    %5 = vector.load %arg4[%c0_4, %c0_5] : memref<128x128xbf16, #tpu.memory_space<vmem>>, vector<128x128xbf16>
    %cst = arith.constant dense<0.000000e+00> : vector<128x128xf32>
    %6 = tpu.matmul %4, %5, %cst {dimension_numbers = #tpu.dot_dimension_numbers<[1], [0], [0], [1], [0, 0, 1, 1], [], []>} : vector<128x128xbf16>, vector<128x128xbf16>, vector<128x128xf32> -> vector<128x128xf32>
    %7 = arith.addf %3, %6 : vector<128x128xf32>
    %c0_6 = arith.constant 0 : index
    %c0_7 = arith.constant 0 : index
    %8 = vector.load %arg7[%c0_6, %c0_7] : memref<128x128xf32, #tpu.memory_space<vmem>>, vector<128x128xf32>
    tpu.vector_store %arg7[%c0_6, %c0_7], %7 {strides = array<i32>} : memref<128x128xf32, #tpu.memory_space<vmem>>, vector<128x128xf32>,
    %c0_i32_8 = arith.constant 0 : i32
    %9 = arith.cmpi eq, %arg2, %c0_i32_8 : i32
    %10 = arith.extui %9 : i1 to i32
    %c0_i32_9 = arith.constant 0 : i32
    %11 = arith.cmpi ne, %10, %c0_i32_9 : i32
    scf.if %11 {
      %c0_10 = arith.constant 0 : index
      %c0_11 = arith.constant 0 : index
      %12 = vector.load %arg7[%c0_10, %c0_11] : memref<128x128xf32, #tpu.memory_space<vmem>>, vector<128x128xf32>
      %c0_12 = arith.constant 0 : index
      %c0_13 = arith.constant 0 : index
      %13 = vector.load %arg5[%c0_12, %c0_13] : memref<128x128xbf16, #tpu.memory_space<vmem>>, vector<128x128xbf16>
      %14 = arith.extf %13 : vector<128x128xbf16> to vector<128x128xf32>
      %15 = arith.addf %12, %14 : vector<128x128xf32>
      %cst_14 = arith.constant 0.000000e+00 : f32
      %16 = vector.broadcast %cst_14 : f32 to vector<128x128xf32>
      %17 = arith.maximumf %15, %16 : vector<128x128xf32>
      %18 = arith.truncf %17 : vector<128x128xf32> to vector<128x128xbf16>
      %c0_15 = arith.constant 0 : index
      %c0_16 = arith.constant 0 : index
      %19 = vector.load %arg6[%c0_15, %c0_16] : memref<128x128xbf16, #tpu.memory_space<vmem>>, vector<128x128xbf16>
      tpu.vector_store %arg6[%c0_15, %c0_16], %18 {strides = array<i32>} : memref<128x128xbf16, #tpu.memory_space<vmem>>, vector<128x128xbf16>,
    } else {
    }
    return
  }
  func.func @transform_0(%arg0: i32, %arg1: i32, %arg2: i32) -> (i32, i32) {
    %c0_i32 = arith.constant 0 : i32
    return %arg0, %arg2 : i32, i32
  }
  func.func @transform_1(%arg0: i32, %arg1: i32, %arg2: i32) -> (i32, i32) {
    %c0_i32 = arith.constant 0 : i32
    return %arg2, %arg1 : i32, i32
  }
  func.func @transform_2(%arg0: i32, %arg1: i32, %arg2: i32) -> (i32, i32) {
    %c0_i32 = arith.constant 0 : i32
    return %arg0, %arg1 : i32, i32
  }
  func.func @transform_3(%arg0: i32, %arg1: i32, %arg2: i32) -> (i32, i32) {
    %c0_i32 = arith.constant 0 : i32
    return %arg0, %arg1 : i32, i32
  }
}

module attributes {stable_mosaic.version = 11 : i64} {
  func.func @_e2v_residual_kernel(%arg0: i32, %arg1: i32, %arg2: i32, %arg3: memref<128x128xbf16, #tpu.memory_space<vmem>>, %arg4: memref<128x128xbf16, #tpu.memory_space<vmem>>, %arg5: memref<128x128xbf16, #tpu.memory_space<vmem>>, %arg6: memref<128x128xf32, #tpu.memory_space<vmem>>, %arg7: memref<128x128xf32, #tpu.memory_space<vmem>>) attributes {dimension_semantics = [#tpu.dimension_semantics<parallel>, #tpu.dimension_semantics<parallel>, #tpu.dimension_semantics<arbitrary>], iteration_bounds = array<i64: 1, 1, 1>, scalar_prefetch = 0 : i64, scratch_operands = 1 : i64, tpu.core_type = #tpu.core_type<tc>, window_params = [{transform_indices = @transform_0, window_bounds = array<i64: 128, 128>}, {transform_indices = @transform_1, window_bounds = array<i64: 128, 128>}, {transform_indices = @transform_2, window_bounds = array<i64: 128, 128>}, {transform_indices = @transform_3, window_bounds = array<i64: 128, 128>}]} {
    %c0_i32 = arith.constant 0 : i32
    %0 = arith.cmpi eq, %arg2, %c0_i32 : i32
    %1 = arith.extui %0 : i1 to i32
    %c0_i32_0 = arith.constant 0 : i32
    %2 = arith.cmpi ne, %1, %c0_i32_0 : i32
    scf.if %2 {
      %cst_10 = arith.constant 0.000000e+00 : f32
      %12 = vector.broadcast %cst_10 : f32 to vector<128x128xf32>
      %c0_11 = arith.constant 0 : index
      %c0_12 = arith.constant 0 : index
      %13 = vector.load %arg7[%c0_11, %c0_12] : memref<128x128xf32, #tpu.memory_space<vmem>>, vector<128x128xf32>
      tpu.vector_store %arg7[%c0_11, %c0_12], %12 {strides = array<i32>} : memref<128x128xf32, #tpu.memory_space<vmem>>, vector<128x128xf32>,
    } else {
    }
    %c0 = arith.constant 0 : index
    %c0_1 = arith.constant 0 : index
    %3 = vector.load %arg7[%c0, %c0_1] : memref<128x128xf32, #tpu.memory_space<vmem>>, vector<128x128xf32>
    %c0_2 = arith.constant 0 : index
    %c0_3 = arith.constant 0 : index
    %4 = vector.load %arg3[%c0_2, %c0_3] : memref<128x128xbf16, #tpu.memory_space<vmem>>, vector<128x128xbf16>
    %c0_4 = arith.constant 0 : index
    %c0_5 = arith.constant 0 : index
    %5 = vector.load %arg4[%c0_4, %c0_5] : memref<128x128xbf16, #tpu.memory_space<vmem>>, vector<128x128xbf16>
    %cst = arith.constant dense<0.000000e+00> : vector<128x128xf32>
    %6 = tpu.matmul %4, %5, %cst {dimension_numbers = #tpu.dot_dimension_numbers<[1], [0], [0], [1], [0, 0, 1, 1], [], []>} : vector<128x128xbf16>, vector<128x128xbf16>, vector<128x128xf32> -> vector<128x128xf32>
    %7 = arith.addf %3, %6 : vector<128x128xf32>
    %c0_6 = arith.constant 0 : index
    %c0_7 = arith.constant 0 : index
    %8 = vector.load %arg7[%c0_6, %c0_7] : memref<128x128xf32, #tpu.memory_space<vmem>>, vector<128x128xf32>
    tpu.vector_store %arg7[%c0_6, %c0_7], %7 {strides = array<i32>} : memref<128x128xf32, #tpu.memory_space<vmem>>, vector<128x128xf32>,
    %c0_i32_8 = arith.constant 0 : i32
    %9 = arith.cmpi eq, %arg2, %c0_i32_8 : i32
    %10 = arith.extui %9 : i1 to i32
    %c0_i32_9 = arith.constant 0 : i32
    %11 = arith.cmpi ne, %10, %c0_i32_9 : i32
    scf.if %11 {
      %c0_10 = arith.constant 0 : index
      %c0_11 = arith.constant 0 : index
      %12 = vector.load %arg7[%c0_10, %c0_11] : memref<128x128xf32, #tpu.memory_space<vmem>>, vector<128x128xf32>
      %c0_12 = arith.constant 0 : index
      %c0_13 = arith.constant 0 : index
      %13 = vector.load %arg5[%c0_12, %c0_13] : memref<128x128xbf16, #tpu.memory_space<vmem>>, vector<128x128xbf16>
      %14 = arith.extf %13 : vector<128x128xbf16> to vector<128x128xf32>
      %15 = arith.addf %12, %14 : vector<128x128xf32>
      %c0_14 = arith.constant 0 : index
      %c0_15 = arith.constant 0 : index
      %16 = vector.load %arg6[%c0_14, %c0_15] : memref<128x128xf32, #tpu.memory_space<vmem>>, vector<128x128xf32>
      tpu.vector_store %arg6[%c0_14, %c0_15], %15 {strides = array<i32>} : memref<128x128xf32, #tpu.memory_space<vmem>>, vector<128x128xf32>,
    } else {
    }
    return
  }
  func.func @transform_0(%arg0: i32, %arg1: i32, %arg2: i32) -> (i32, i32) {
    %c0_i32 = arith.constant 0 : i32
    return %arg0, %arg2 : i32, i32
  }
  func.func @transform_1(%arg0: i32, %arg1: i32, %arg2: i32) -> (i32, i32) {
    %c0_i32 = arith.constant 0 : i32
    return %arg2, %arg1 : i32, i32
  }
  func.func @transform_2(%arg0: i32, %arg1: i32, %arg2: i32) -> (i32, i32) {
    %c0_i32 = arith.constant 0 : i32
    return %arg0, %arg1 : i32, i32
  }
  func.func @transform_3(%arg0: i32, %arg1: i32, %arg2: i32) -> (i32, i32) {
    %c0_i32 = arith.constant 0 : i32
    return %arg0, %arg1 : i32, i32
  }
}

</mosaic_0001>

<llo_original>
// kernel: la_unisage_forward.10
$region0: #{la_unisage_forward.10}
  #allocation0 [shape = 'u32[]', space=smem, size = 0x4, offset = 0x4, fixed_abs, tag = 'smem constant byte address 0x4 - core index']
  #allocation1 [shape = 'u32[144,128]{1,0:T(1,128)}', space=vmem, size = 0x12000, scoped, tag = 'internal scratch']
  #allocation2 [shape = 'f32[128,128]{1,0:T(8,128)}', space=vmem, size = 0x10000, scoped, tag = 'scratch operand']
  %s0 = inlined_call_operand.vmem [shape: bf16[128,128], index: 0, kind: input, shape index: {}]
  %s1 = inlined_call_operand.vmem [shape: bf16[128,128], index: 1, kind: input, shape index: {}]
  %s2 = inlined_call_operand.vmem [shape: bf16[128,128], index: 2, kind: input, shape index: {}]
  %s3 = inlined_call_operand.vmem [shape: bf16[128,128], index: 3, kind: output, shape index: {}]
  %s4 = sld [smem:[#allocation0]]
  $region30: #{la_unisage_forward.10} parent=0
    _
  %s6 = ssub.s32 1, %s4
  %s7 = scalar_select 0, %s6, %s4
  // Predicated region
  $region2: #{la_unisage_forward.10} parent=0 // pred_check
    _
  $region3: #{la_unisage_forward.10} parent=0 // pred_check_branch
    %9 = sbr.rel (0) target = $region5
  $region4: #{la_unisage_forward.10} parent=0 // pred_region
    _
  $region5: #{la_unisage_forward.10} parent=0 // pred_fallthru
    _
  // Predicated region
  $region6: #{la_unisage_forward.10} parent=0 // pred_check
    _
  $region7: #{la_unisage_forward.10} parent=0 // pred_check_branch
    %11 = sbr.rel (0) target = $region9
  $region8: #{la_unisage_forward.10} parent=0 // pred_region
    _
  $region9: #{la_unisage_forward.10} parent=0 // pred_fallthru
    _
  // Predicated region
  $region10: #{la_unisage_forward.10} parent=0 // pred_check
    _
  $region11: #{la_unisage_forward.10} parent=0 // pred_check_branch
    %13 = sbr.rel (0) target = $region13
  $region12: #{la_unisage_forward.10} parent=0 // pred_region
    _
  $region13: #{la_unisage_forward.10} parent=0 // pred_fallthru
    _
  %p15 = scmp.eq.s32.totalorder 0, 0
  // Predicated region
  $region14: #{la_unisage_forward.10} parent=0 // pred_check
    %p16 = pneg %p15
  $region15: #{la_unisage_forward.10} parent=0 // pred_check_branch
    %18 = sbr.rel (%p16) target = $region17
  $region16: #{la_unisage_forward.10} parent=0 // pred_region
    %19 = vst [vmem:[#allocation2] sm:$0xff] 0.0
    %20 = vst [vmem:[#allocation2 + $0x8] sm:$0xff] 0.0
    %21 = vst [vmem:[#allocation2 + $0x10] sm:$0xff] 0.0
    %22 = vst [vmem:[#allocation2 + $0x18] sm:$0xff] 0.0
    %23 = vst [vmem:[#allocation2 + $0x20] sm:$0xff] 0.0
    %24 = vst [vmem:[#allocation2 + $0x28] sm:$0xff] 0.0
    %25 = vst [vmem:[#allocation2 + $0x30] sm:$0xff] 0.0
    %26 = vst [vmem:[#allocation2 + $0x38] sm:$0xff] 0.0
    %27 = vst [vmem:[#allocation2 + $0x40] sm:$0xff] 0.0
    %28 = vst [vmem:[#allocation2 + $0x48] sm:$0xff] 0.0
    %29 = vst [vmem:[#allocation2 + $0x50] sm:$0xff] 0.0
    %30 = vst [vmem:[#allocation2 + $0x58] sm:$0xff] 0.0
    %31 = vst [vmem:[#allocation2 + $0x60] sm:$0xff] 0.0
    %32 = vst [vmem:[#allocation2 + $0x68] sm:$0xff] 0.0
    %33 = vst [vmem:[#allocation2 + $0x70] sm:$0xff] 0.0
    %34 = vst [vmem:[#allocation2 + $0x78] sm:$0xff] 0.0
  $region17: #{la_unisage_forward.10} parent=0 // pred_fallthru
    _
  %v35 = vld [vmem:[#allocation2] sm:$0xff]
  %v36 = vld [vmem:[#allocation2 + $0x8] sm:$0xff]
  %v37 = vld [vmem:[#allocation2 + $0x10] sm:$0xff]
  %v38 = vld [vmem:[#allocation2 + $0x18] sm:$0xff]
  %v39 = vld [vmem:[#allocation2 + $0x20] sm:$0xff]
  %v40 = vld [vmem:[#allocation2 + $0x28] sm:$0xff]
  %v41 = vld [vmem:[#allocation2 + $0x30] sm:$0xff]
  %v42 = vld [vmem:[#allocation2 + $0x38] sm:$0xff]
  %v43 = vld [vmem:[#allocation2 + $0x40] sm:$0xff]
  %v44 = vld [vmem:[#allocation2 + $0x48] sm:$0xff]
  %v45 = vld [vmem:[#allocation2 + $0x50] sm:$0xff]
  %v46 = vld [vmem:[#allocation2 + $0x58] sm:$0xff]
  %v47 = vld [vmem:[#allocation2 + $0x60] sm:$0xff]
  %v48 = vld [vmem:[#allocation2 + $0x68] sm:$0xff]
  %v49 = vld [vmem:[#allocation2 + $0x70] sm:$0xff]
  %v50 = vld [vmem:[#allocation2 + $0x78] sm:$0xff]
  %v51 = vld [vmem:[%s0] sm:$0xf]
  %v52 = vld [vmem:[%s0 + $0x4] sm:$0xf]
  %v53 = vld [vmem:[%s0 + $0x8] sm:$0xf]
  %v54 = vld [vmem:[%s0 + $0xc] sm:$0xf]
  %v55 = vld [vmem:[%s0 + $0x10] sm:$0xf]
  %v56 = vld [vmem:[%s0 + $0x14] sm:$0xf]
  %v57 = vld [vmem:[%s0 + $0x18] sm:$0xf]
  %v58 = vld [vmem:[%s0 + $0x1c] sm:$0xf]
  %v59 = vld [vmem:[%s0 + $0x20] sm:$0xf]
  %v60 = vld [vmem:[%s0 + $0x24] sm:$0xf]
  %v61 = vld [vmem:[%s0 + $0x28] sm:$0xf]
  %v62 = vld [vmem:[%s0 + $0x2c] sm:$0xf]
  %v63 = vld [vmem:[%s0 + $0x30] sm:$0xf]
  %v64 = vld [vmem:[%s0 + $0x34] sm:$0xf]
  %v65 = vld [vmem:[%s0 + $0x38] sm:$0xf]
  %v66 = vld [vmem:[%s0 + $0x3c] sm:$0xf]
  %v67 = vld [vmem:[%s1] sm:$0xf]
  %v68 = vld [vmem:[%s1 + $0x4] sm:$0xf]
  %v69 = vld [vmem:[%s1 + $0x8] sm:$0xf]
  %v70 = vld [vmem:[%s1 + $0xc] sm:$0xf]
  %v71 = vld [vmem:[%s1 + $0x10] sm:$0xf]
  %v72 = vld [vmem:[%s1 + $0x14] sm:$0xf]
  %v73 = vld [vmem:[%s1 + $0x18] sm:$0xf]
  %v74 = vld [vmem:[%s1 + $0x1c] sm:$0xf]
  %v75 = vld [vmem:[%s1 + $0x20] sm:$0xf]
  %v76 = vld [vmem:[%s1 + $0x24] sm:$0xf]
  %v77 = vld [vmem:[%s1 + $0x28] sm:$0xf]
  %v78 = vld [vmem:[%s1 + $0x2c] sm:$0xf]
  %v79 = vld [vmem:[%s1 + $0x30] sm:$0xf]
  %v80 = vld [vmem:[%s1 + $0x34] sm:$0xf]
  %v81 = vld [vmem:[%s1 + $0x38] sm:$0xf]
  %v82 = vld [vmem:[%s1 + $0x3c] sm:$0xf]
  %v99 = vunpack.c.l.b16 %v51
  %v100 = vunpack.c.l.b16 %v52
  %v101 = vunpack.c.l.b16 %v53
  %v102 = vunpack.c.l.b16 %v54
  %v103 = vunpack.c.l.b16 %v55
  %v104 = vunpack.c.l.b16 %v56
  %v105 = vunpack.c.l.b16 %v57
  %v106 = vunpack.c.l.b16 %v58
  %v107 = vunpack.c.l.b16 %v59
  %v108 = vunpack.c.l.b16 %v60
  %v109 = vunpack.c.l.b16 %v61
  %v110 = vunpack.c.l.b16 %v62
  %v111 = vunpack.c.l.b16 %v63
  %v112 = vunpack.c.l.b16 %v64
  %v113 = vunpack.c.l.b16 %v65
  %v114 = vunpack.c.l.b16 %v66
  %v115 = vpack.c.b16 %v100, %v99
  %v116 = vpack.c.b16 %v102, %v101
  %v117 = vpack.c.b16 %v104, %v103
  %v118 = vpack.c.b16 %v106, %v105
  %v119 = vpack.c.b16 %v108, %v107
  %v120 = vpack.c.b16 %v110, %v109
  %v121 = vpack.c.b16 %v112, %v111
  %v122 = vpack.c.b16 %v114, %v113
  %v147 = vunpack.c.l.b16 %v67
  %v148 = vunpack.c.l.b16 %v68
  %v149 = vunpack.c.l.b16 %v69
  %v150 = vunpack.c.l.b16 %v70
  %v151 = vunpack.c.l.b16 %v71
  %v152 = vunpack.c.l.b16 %v72
  %v153 = vunpack.c.l.b16 %v73
  %v154 = vunpack.c.l.b16 %v74
  %v155 = vunpack.c.l.b16 %v75
  %v156 = vunpack.c.l.b16 %v76
  %v157 = vunpack.c.l.b16 %v77
  %v158 = vunpack.c.l.b16 %v78
  %v159 = vunpack.c.l.b16 %v79
  %v160 = vunpack.c.l.b16 %v80
  %v161 = vunpack.c.l.b16 %v81
  %v162 = vunpack.c.l.b16 %v82
  %v163 = vpack.c.b16 %v148, %v147
  %v164 = vpack.c.b16 %v150, %v149
  %v165 = vpack.c.b16 %v152, %v151
  %v166 = vpack.c.b16 %v154, %v153
  %v167 = vpack.c.b16 %v156, %v155
  %v168 = vpack.c.b16 %v158, %v157
  %v169 = vpack.c.b16 %v160, %v159
  %v170 = vpack.c.b16 %v162, %v161
  %179 = vmatprep.subr.bf16.mxu0 0
  %180 = vmatpush1.bf16.msra.mxu0 %v170
  %181 = vmatprep.subr.bf16.mxu0 0
  %182 = vmatpush1.bf16.msra.mxu0 %v169
  %183 = vmatprep.subr.bf16.mxu0 0
  %184 = vmatpush1.bf16.msra.mxu0 %v168
  %185 = vmatprep.subr.bf16.mxu0 0
  %186 = vmatpush1.bf16.msra.mxu0 %v167
  %187 = vmatprep.subr.bf16.mxu0 0
  %188 = vmatpush1.bf16.msra.mxu0 %v166
  %189 = vmatprep.subr.bf16.mxu0 0
  %190 = vmatpush1.bf16.msra.mxu0 %v165
  %191 = vmatprep.subr.bf16.mxu0 0
  %192 = vmatpush1.bf16.msra.mxu0 %v164
  %193 = vmatprep.subr.bf16.mxu0 0
  %194 = vmatpush1.bf16.msra.mxu0 %v163
  %195 = vmatprep.subr.bf16.mxu0 0
  %196 = vmatpush2.bf16.msra.mxu0 0
  %197 = vmatprep.subr.bf16.mxu0 0
  %198 = vmatpush2.bf16.msra.mxu0 0
  %199 = vmatprep.subr.bf16.mxu0 0
  %200 = vmatpush2.bf16.msra.mxu0 0
  %201 = vmatprep.subr.bf16.mxu0 0
  %202 = vmatpush2.bf16.msra.mxu0 0
  %203 = vmatprep.subr.bf16.mxu0 0
  %204 = vmatpush2.bf16.msra.mxu0 0
  %205 = vmatprep.subr.bf16.mxu0 0
  %206 = vmatpush2.bf16.msra.mxu0 0
  %207 = vmatprep.subr.bf16.mxu0 0
  %208 = vmatpush2.bf16.msra.mxu0 0
  %209 = vmatprep.subr.bf16.mxu0 0
  %210 = vmatpush2.bf16.msra.mxu0 0
  %211 = vmatprep.mubr.bf16.mxu0 0
  %212 = vmatmul.mubr.bf16.gmra.mxu0 %v115
  %v213 = vpop.f32.mrf.mxu0
  %v214 = vadd.f32 0.0, %v213
  %v215 = vpop.f32.mrf.mxu0
  %v216 = vpop.f32.mrf.mxu0
  %v217 = vadd.f32 0.0, %v216
  %v218 = vpop.f32.mrf.mxu0
  %219 = vmatprep.mubr.bf16.mxu0 0
  %220 = vmatmul.mubr.bf16.gmra.mxu0 %v116
  %v221 = vpop.f32.mrf.mxu0
  %v222 = vadd.f32 0.0, %v221
  %v223 = vpop.f32.mrf.mxu0
  %v224 = vpop.f32.mrf.mxu0
  %v225 = vadd.f32 0.0, %v224
  %v226 = vpop.f32.mrf.mxu0
  %227 = vmatprep.mubr.bf16.mxu0 0
  %228 = vmatmul.mubr.bf16.gmra.mxu0 %v117
  %v229 = vpop.f32.mrf.mxu0
  %v230 = vadd.f32 0.0, %v229
  %v231 = vpop.f32.mrf.mxu0
  %v232 = vpop.f32.mrf.mxu0
  %v233 = vadd.f32 0.0, %v232
  %v234 = vpop.f32.mrf.mxu0
  %235 = vmatprep.mubr.bf16.mxu0 0
  %236 = vmatmul.mubr.bf16.gmra.mxu0 %v118
  %v237 = vpop.f32.mrf.mxu0
  %v238 = vadd.f32 0.0, %v237
  %v239 = vpop.f32.mrf.mxu0
  %v240 = vpop.f32.mrf.mxu0
  %v241 = vadd.f32 0.0, %v240
  %v242 = vpop.f32.mrf.mxu0
  %243 = vmatprep.mubr.bf16.mxu0 0
  %244 = vmatmul.mubr.bf16.gmra.mxu0 %v119
  %v245 = vpop.f32.mrf.mxu0
  %v246 = vadd.f32 0.0, %v245
  %v247 = vpop.f32.mrf.mxu0
  %v248 = vpop.f32.mrf.mxu0
  %v249 = vadd.f32 0.0, %v248
  %v250 = vpop.f32.mrf.mxu0
  %251 = vmatprep.mubr.bf16.mxu0 0
  %252 = vmatmul.mubr.bf16.gmra.mxu0 %v120
  %v253 = vpop.f32.mrf.mxu0
  %v254 = vadd.f32 0.0, %v253
  %v255 = vpop.f32.mrf.mxu0
  %v256 = vpop.f32.mrf.mxu0
  %v257 = vadd.f32 0.0, %v256
  %v258 = vpop.f32.mrf.mxu0
  %259 = vmatprep.mubr.bf16.mxu0 0
  %260 = vmatmul.mubr.bf16.gmra.mxu0 %v121
  %v261 = vpop.f32.mrf.mxu0
  %v262 = vadd.f32 0.0, %v261
  %v263 = vpop.f32.mrf.mxu0
  %v264 = vpop.f32.mrf.mxu0
  %v265 = vadd.f32 0.0, %v264
  %v266 = vpop.f32.mrf.mxu0
  %267 = vmatprep.mubr.bf16.mxu0 0
  %268 = vmatmul.mubr.bf16.gmra.mxu0 %v122
  %v269 = vpop.f32.mrf.mxu0
  %v270 = vadd.f32 0.0, %v269
  %v271 = vpop.f32.mrf.mxu0
  %v272 = vpop.f32.mrf.mxu0
  %v273 = vadd.f32 0.0, %v272
  %v274 = vpop.f32.mrf.mxu0
  %275 = vdwg.mxu0
  %v276 = vadd.f32 %v35, %v214
  %v277 = vadd.f32 %v36, %v217
  %v278 = vadd.f32 %v37, %v222
  %v279 = vadd.f32 %v38, %v225
  %v280 = vadd.f32 %v39, %v230
  %v281 = vadd.f32 %v40, %v233
  %v282 = vadd.f32 %v41, %v238
  %v283 = vadd.f32 %v42, %v241
  %v284 = vadd.f32 %v43, %v246
  %v285 = vadd.f32 %v44, %v249
  %v286 = vadd.f32 %v45, %v254
  %v287 = vadd.f32 %v46, %v257
  %v288 = vadd.f32 %v47, %v262
  %v289 = vadd.f32 %v48, %v265
  %v290 = vadd.f32 %v49, %v270
  %v291 = vadd.f32 %v50, %v273
  %292 = vst [vmem:[#allocation2] sm:$0xff] %v276
  %293 = vst [vmem:[#allocation2 + $0x8] sm:$0xff] %v277
  %294 = vst [vmem:[#allocation2 + $0x10] sm:$0xff] %v278
  %295 = vst [vmem:[#allocation2 + $0x18] sm:$0xff] %v279
  %296 = vst [vmem:[#allocation2 + $0x20] sm:$0xff] %v280
  %297 = vst [vmem:[#allocation2 + $0x28] sm:$0xff] %v281
  %298 = vst [vmem:[#allocation2 + $0x30] sm:$0xff] %v282
  %299 = vst [vmem:[#allocation2 + $0x38] sm:$0xff] %v283
  %300 = vst [vmem:[#allocation2 + $0x40] sm:$0xff] %v284
  %301 = vst [vmem:[#allocation2 + $0x48] sm:$0xff] %v285
  %302 = vst [vmem:[#allocation2 + $0x50] sm:$0xff] %v286
  %303 = vst [vmem:[#allocation2 + $0x58] sm:$0xff] %v287
  %304 = vst [vmem:[#allocation2 + $0x60] sm:$0xff] %v288
  %305 = vst [vmem:[#allocation2 + $0x68] sm:$0xff] %v289
  %306 = vst [vmem:[#allocation2 + $0x70] sm:$0xff] %v290
  %307 = vst [vmem:[#allocation2 + $0x78] sm:$0xff] %v291
  // Predicated region
  $region18: #{la_unisage_forward.10} parent=0 // pred_check
    %p308 = pneg %p15
  $region19: #{la_unisage_forward.10} parent=0 // pred_check_branch
    %310 = sbr.rel (%p308) target = $region21
  $region20: #{la_unisage_forward.10} parent=0 // pred_region
    %v311 = vld [vmem:[#allocation2] sm:$0xff]
    %v312 = vld [vmem:[#allocation2 + $0x8] sm:$0xff]
    %v313 = vld [vmem:[#allocation2 + $0x10] sm:$0xff]
    %v314 = vld [vmem:[#allocation2 + $0x18] sm:$0xff]
    %v315 = vld [vmem:[#allocation2 + $0x20] sm:$0xff]
    %v316 = vld [vmem:[#allocation2 + $0x28] sm:$0xff]
    %v317 = vld [vmem:[#allocation2 + $0x30] sm:$0xff]
    %v318 = vld [vmem:[#allocation2 + $0x38] sm:$0xff]
    %v319 = vld [vmem:[#allocation2 + $0x40] sm:$0xff]
    %v320 = vld [vmem:[#allocation2 + $0x48] sm:$0xff]
    %v321 = vld [vmem:[#allocation2 + $0x50] sm:$0xff]
    %v322 = vld [vmem:[#allocation2 + $0x58] sm:$0xff]
    %v323 = vld [vmem:[#allocation2 + $0x60] sm:$0xff]
    %v324 = vld [vmem:[#allocation2 + $0x68] sm:$0xff]
    %v325 = vld [vmem:[#allocation2 + $0x70] sm:$0xff]
    %v326 = vld [vmem:[#allocation2 + $0x78] sm:$0xff]
    %v327 = vld [vmem:[%s2] sm:$0xf]
    %v328 = vld [vmem:[%s2 + $0x4] sm:$0xf]
    %v329 = vld [vmem:[%s2 + $0x8] sm:$0xf]
    %v330 = vld [vmem:[%s2 + $0xc] sm:$0xf]
    %v331 = vld [vmem:[%s2 + $0x10] sm:$0xf]
    %v332 = vld [vmem:[%s2 + $0x14] sm:$0xf]
    %v333 = vld [vmem:[%s2 + $0x18] sm:$0xf]
    %v334 = vld [vmem:[%s2 + $0x1c] sm:$0xf]
    %v335 = vld [vmem:[%s2 + $0x20] sm:$0xf]
    %v336 = vld [vmem:[%s2 + $0x24] sm:$0xf]
    %v337 = vld [vmem:[%s2 + $0x28] sm:$0xf]
    %v338 = vld [vmem:[%s2 + $0x2c] sm:$0xf]
    %v339 = vld [vmem:[%s2 + $0x30] sm:$0xf]
    %v340 = vld [vmem:[%s2 + $0x34] sm:$0xf]
    %v341 = vld [vmem:[%s2 + $0x38] sm:$0xf]
    %v342 = vld [vmem:[%s2 + $0x3c] sm:$0xf]
    %v343 = vunpack.c.l.bf16 %v327
    %v344 = vunpack.c.l.bf16 %v328
    %v345 = vunpack.c.l.bf16 %v329
    %v346 = vunpack.c.l.bf16 %v330
    %v347 = vunpack.c.l.bf16 %v331
    %v348 = vunpack.c.l.bf16 %v332
    %v349 = vunpack.c.l.bf16 %v333
    %v350 = vunpack.c.l.bf16 %v334
    %v351 = vunpack.c.l.bf16 %v335
    %v352 = vunpack.c.l.bf16 %v336
    %v353 = vunpack.c.l.bf16 %v337
    %v354 = vunpack.c.l.bf16 %v338
    %v355 = vunpack.c.l.bf16 %v339
    %v356 = vunpack.c.l.bf16 %v340
    %v357 = vunpack.c.l.bf16 %v341
    %v358 = vunpack.c.l.bf16 %v342
    %v359 = vadd.f32 %v311, %v343
    %v360 = vadd.f32 %v312, %v344
    %v361 = vadd.f32 %v313, %v345
    %v362 = vadd.f32 %v314, %v346
    %v363 = vadd.f32 %v315, %v347
    %v364 = vadd.f32 %v316, %v348
    %v365 = vadd.f32 %v317, %v349
    %v366 = vadd.f32 %v318, %v350
    %v367 = vadd.f32 %v319, %v351
    %v368 = vadd.f32 %v320, %v352
    %v369 = vadd.f32 %v321, %v353
    %v370 = vadd.f32 %v322, %v354
    %v371 = vadd.f32 %v323, %v355
    %v372 = vadd.f32 %v324, %v356
    %v373 = vadd.f32 %v325, %v357
    %v374 = vadd.f32 %v326, %v358
    %v375 = vmax.f32 %v359, 0.0
    %v376 = vmax.f32 %v360, 0.0
    %v377 = vmax.f32 %v361, 0.0
    %v378 = vmax.f32 %v362, 0.0
    %v379 = vmax.f32 %v363, 0.0
    %v380 = vmax.f32 %v364, 0.0
    %v381 = vmax.f32 %v365, 0.0
    %v382 = vmax.f32 %v366, 0.0
    %v383 = vmax.f32 %v367, 0.0
    %v384 = vmax.f32 %v368, 0.0
    %v385 = vmax.f32 %v369, 0.0
    %v386 = vmax.f32 %v370, 0.0
    %v387 = vmax.f32 %v371, 0.0
    %v388 = vmax.f32 %v372, 0.0
    %v389 = vmax.f32 %v373, 0.0
    %v390 = vmax.f32 %v374, 0.0
    %v391 = vpack.c.bf16 %v376, %v375
    %v392 = vpack.c.bf16 %v378, %v377
    %v393 = vpack.c.bf16 %v380, %v379
    %v394 = vpack.c.bf16 %v382, %v381
    %v395 = vpack.c.bf16 %v384, %v383
    %v396 = vpack.c.bf16 %v386, %v385
    %v397 = vpack.c.bf16 %v388, %v387
    %v398 = vpack.c.bf16 %v390, %v389
    %v407 = vunpack.c.l.b16 %v391
    %v408 = vunpack.c.h.b16 %v391
    %v409 = vunpack.c.l.b16 %v392
    %v410 = vunpack.c.h.b16 %v392
    %v411 = vunpack.c.l.b16 %v393
    %v412 = vunpack.c.h.b16 %v393
    %v413 = vunpack.c.l.b16 %v394
    %v414 = vunpack.c.h.b16 %v394
    %v415 = vunpack.c.l.b16 %v395
    %v416 = vunpack.c.h.b16 %v395
    %v417 = vunpack.c.l.b16 %v396
    %v418 = vunpack.c.h.b16 %v396
    %v419 = vunpack.c.l.b16 %v397
    %v420 = vunpack.c.h.b16 %v397
    %v421 = vunpack.c.l.b16 %v398
    %v422 = vunpack.c.h.b16 %v398
    %v423 = vpack.c.b16 %v407, %v407
    %v424 = vpack.c.b16 %v408, %v408
    %v425 = vpack.c.b16 %v409, %v409
    %v426 = vpack.c.b16 %v410, %v410
    %v427 = vpack.c.b16 %v411, %v411
    %v428 = vpack.c.b16 %v412, %v412
    %v429 = vpack.c.b16 %v413, %v413
    %v430 = vpack.c.b16 %v414, %v414
    %v431 = vpack.c.b16 %v415, %v415
    %v432 = vpack.c.b16 %v416, %v416
    %v433 = vpack.c.b16 %v417, %v417
    %v434 = vpack.c.b16 %v418, %v418
    %v435 = vpack.c.b16 %v419, %v419
    %v436 = vpack.c.b16 %v420, %v420
    %v437 = vpack.c.b16 %v421, %v421
    %v438 = vpack.c.b16 %v422, %v422
    %455 = vst [vmem:[%s3] sm:$0xf] %v423
    %456 = vst [vmem:[%s3 + $0x4] sm:$0xf] %v424
    %457 = vst [vmem:[%s3 + $0x8] sm:$0xf] %v425
    %458 = vst [vmem:[%s3 + $0xc] sm:$0xf] %v426
    %459 = vst [vmem:[%s3 + $0x10] sm:$0xf] %v427
    %460 = vst [vmem:[%s3 + $0x14] sm:$0xf] %v428
    %461 = vst [vmem:[%s3 + $0x18] sm:$0xf] %v429
    %462 = vst [vmem:[%s3 + $0x1c] sm:$0xf] %v430
    %463 = vst [vmem:[%s3 + $0x20] sm:$0xf] %v431
    %464 = vst [vmem:[%s3 + $0x24] sm:$0xf] %v432
    %465 = vst [vmem:[%s3 + $0x28] sm:$0xf] %v433
    %466 = vst [vmem:[%s3 + $0x2c] sm:$0xf] %v434
    %467 = vst [vmem:[%s3 + $0x30] sm:$0xf] %v435
    %468 = vst [vmem:[%s3 + $0x34] sm:$0xf] %v436
    %469 = vst [vmem:[%s3 + $0x38] sm:$0xf] %v437
    %470 = vst [vmem:[%s3 + $0x3c] sm:$0xf] %v438
  $region21: #{la_unisage_forward.10} parent=0 // pred_fallthru
    _
  // Predicated region
  $region22: #{la_unisage_forward.10} parent=0 // pred_check
    _
  $region23: #{la_unisage_forward.10} parent=0 // pred_check_branch
    %472 = sbr.rel (0) target = $region25
  $region24: #{la_unisage_forward.10} parent=0 // pred_region
    _
  $region25: #{la_unisage_forward.10} parent=0 // pred_fallthru
    _
  // Predicated region
  $region26: #{la_unisage_forward.10} parent=0 // pred_check
    _
  $region27: #{la_unisage_forward.10} parent=0 // pred_check_branch
    %474 = sbr.rel (0) target = $region29
  $region28: #{la_unisage_forward.10} parent=0 // pred_region
    _
  $region29: #{la_unisage_forward.10} parent=0 // pred_fallthru
    _

// kernel: la_unisage_forward.8
$region0: #{la_unisage_forward.8}
  #allocation0 [shape = 'u32[]', space=smem, size = 0x4, offset = 0x4, fixed_abs, tag = 'smem constant byte address 0x4 - core index']
  #allocation1 [shape = 'u32[144,128]{1,0:T(1,128)}', space=vmem, size = 0x12000, scoped, tag = 'internal scratch']
  #allocation2 [shape = 'f32[64,128]{1,0:T(8,128)}', space=vmem, size = 0x8000, scoped, tag = 'scratch operand']
  %s0 = inlined_call_operand.vmem [shape: bf16[64,128], index: 0, kind: input, shape index: {}]
  %s1 = inlined_call_operand.vmem [shape: bf16[128,128], index: 1, kind: input, shape index: {}]
  %s2 = inlined_call_operand.vmem [shape: f32[1,128], index: 2, kind: input, shape index: {}]
  %s3 = inlined_call_operand.vmem [shape: bf16[64,128], index: 3, kind: output, shape index: {}]
  %s4 = sld [smem:[#allocation0]]
  $region30: #{la_unisage_forward.8} parent=0
    _
  %s6 = ssub.s32 1, %s4
  %s7 = scalar_select 0, %s6, %s4
  // Predicated region
  $region2: #{la_unisage_forward.8} parent=0 // pred_check
    _
  $region3: #{la_unisage_forward.8} parent=0 // pred_check_branch
    %9 = sbr.rel (0) target = $region5
  $region4: #{la_unisage_forward.8} parent=0 // pred_region
    _
  $region5: #{la_unisage_forward.8} parent=0 // pred_fallthru
    _
  // Predicated region
  $region6: #{la_unisage_forward.8} parent=0 // pred_check
    _
  $region7: #{la_unisage_forward.8} parent=0 // pred_check_branch
    %11 = sbr.rel (0) target = $region9
  $region8: #{la_unisage_forward.8} parent=0 // pred_region
    _
  $region9: #{la_unisage_forward.8} parent=0 // pred_fallthru
    _
  // Predicated region
  $region10: #{la_unisage_forward.8} parent=0 // pred_check
    _
  $region11: #{la_unisage_forward.8} parent=0 // pred_check_branch
    %13 = sbr.rel (0) target = $region13
  $region12: #{la_unisage_forward.8} parent=0 // pred_region
    _
  $region13: #{la_unisage_forward.8} parent=0 // pred_fallthru
    _
  %p15 = scmp.eq.s32.totalorder 0, 0
  // Predicated region
  $region14: #{la_unisage_forward.8} parent=0 // pred_check
    %p16 = pneg %p15
  $region15: #{la_unisage_forward.8} parent=0 // pred_check_branch
    %18 = sbr.rel (%p16) target = $region17
  $region16: #{la_unisage_forward.8} parent=0 // pred_region
    %19 = vst [vmem:[#allocation2] sm:$0xff] 0.0
    %20 = vst [vmem:[#allocation2 + $0x8] sm:$0xff] 0.0
    %21 = vst [vmem:[#allocation2 + $0x10] sm:$0xff] 0.0
    %22 = vst [vmem:[#allocation2 + $0x18] sm:$0xff] 0.0
    %23 = vst [vmem:[#allocation2 + $0x20] sm:$0xff] 0.0
    %24 = vst [vmem:[#allocation2 + $0x28] sm:$0xff] 0.0
    %25 = vst [vmem:[#allocation2 + $0x30] sm:$0xff] 0.0
    %26 = vst [vmem:[#allocation2 + $0x38] sm:$0xff] 0.0
  $region17: #{la_unisage_forward.8} parent=0 // pred_fallthru
    _
  %v27 = vld [vmem:[#allocation2] sm:$0xff]
  %v28 = vld [vmem:[#allocation2 + $0x8] sm:$0xff]
  %v29 = vld [vmem:[#allocation2 + $0x10] sm:$0xff]
  %v30 = vld [vmem:[#allocation2 + $0x18] sm:$0xff]
  %v31 = vld [vmem:[#allocation2 + $0x20] sm:$0xff]
  %v32 = vld [vmem:[#allocation2 + $0x28] sm:$0xff]
  %v33 = vld [vmem:[#allocation2 + $0x30] sm:$0xff]
  %v34 = vld [vmem:[#allocation2 + $0x38] sm:$0xff]
  %v35 = vld [vmem:[%s0] sm:$0xf]
  %v36 = vld [vmem:[%s0 + $0x4] sm:$0xf]
  %v37 = vld [vmem:[%s0 + $0x8] sm:$0xf]
  %v38 = vld [vmem:[%s0 + $0xc] sm:$0xf]
  %v39 = vld [vmem:[%s0 + $0x10] sm:$0xf]
  %v40 = vld [vmem:[%s0 + $0x14] sm:$0xf]
  %v41 = vld [vmem:[%s0 + $0x18] sm:$0xf]
  %v42 = vld [vmem:[%s0 + $0x1c] sm:$0xf]
  %v43 = vld [vmem:[%s1] sm:$0xf]
  %v44 = vld [vmem:[%s1 + $0x4] sm:$0xf]
  %v45 = vld [vmem:[%s1 + $0x8] sm:$0xf]
  %v46 = vld [vmem:[%s1 + $0xc] sm:$0xf]
  %v47 = vld [vmem:[%s1 + $0x10] sm:$0xf]
  %v48 = vld [vmem:[%s1 + $0x14] sm:$0xf]
  %v49 = vld [vmem:[%s1 + $0x18] sm:$0xf]
  %v50 = vld [vmem:[%s1 + $0x1c] sm:$0xf]
  %v51 = vld [vmem:[%s1 + $0x20] sm:$0xf]
  %v52 = vld [vmem:[%s1 + $0x24] sm:$0xf]
  %v53 = vld [vmem:[%s1 + $0x28] sm:$0xf]
  %v54 = vld [vmem:[%s1 + $0x2c] sm:$0xf]
  %v55 = vld [vmem:[%s1 + $0x30] sm:$0xf]
  %v56 = vld [vmem:[%s1 + $0x34] sm:$0xf]
  %v57 = vld [vmem:[%s1 + $0x38] sm:$0xf]
  %v58 = vld [vmem:[%s1 + $0x3c] sm:$0xf]
  %v67 = vunpack.c.l.b16 %v35
  %v68 = vunpack.c.l.b16 %v36
  %v69 = vunpack.c.l.b16 %v37
  %v70 = vunpack.c.l.b16 %v38
  %v71 = vunpack.c.l.b16 %v39
  %v72 = vunpack.c.l.b16 %v40
  %v73 = vunpack.c.l.b16 %v41
  %v74 = vunpack.c.l.b16 %v42
  %v75 = vpack.c.b16 %v68, %v67
  %v76 = vpack.c.b16 %v70, %v69
  %v77 = vpack.c.b16 %v72, %v71
  %v78 = vpack.c.b16 %v74, %v73
  %v99 = vunpack.c.l.b16 %v43
  %v100 = vunpack.c.l.b16 %v44
  %v101 = vunpack.c.l.b16 %v45
  %v102 = vunpack.c.l.b16 %v46
  %v103 = vunpack.c.l.b16 %v47
  %v104 = vunpack.c.l.b16 %v48
  %v105 = vunpack.c.l.b16 %v49
  %v106 = vunpack.c.l.b16 %v50
  %v107 = vunpack.c.l.b16 %v51
  %v108 = vunpack.c.l.b16 %v52
  %v109 = vunpack.c.l.b16 %v53
  %v110 = vunpack.c.l.b16 %v54
  %v111 = vunpack.c.l.b16 %v55
  %v112 = vunpack.c.l.b16 %v56
  %v113 = vunpack.c.l.b16 %v57
  %v114 = vunpack.c.l.b16 %v58
  %v115 = vpack.c.b16 %v100, %v99
  %v116 = vpack.c.b16 %v102, %v101
  %v117 = vpack.c.b16 %v104, %v103
  %v118 = vpack.c.b16 %v106, %v105
  %v119 = vpack.c.b16 %v108, %v107
  %v120 = vpack.c.b16 %v110, %v109
  %v121 = vpack.c.b16 %v112, %v111
  %v122 = vpack.c.b16 %v114, %v113
  %131 = vmatprep.subr.bf16.mxu0 0
  %132 = vmatpush1.bf16.msra.mxu0 %v122
  %133 = vmatprep.subr.bf16.mxu0 0
  %134 = vmatpush1.bf16.msra.mxu0 %v121
  %135 = vmatprep.subr.bf16.mxu0 0
  %136 = vmatpush1.bf16.msra.mxu0 %v120
  %137 = vmatprep.subr.bf16.mxu0 0
  %138 = vmatpush1.bf16.msra.mxu0 %v119
  %139 = vmatprep.subr.bf16.mxu0 0
  %140 = vmatpush1.bf16.msra.mxu0 %v118
  %141 = vmatprep.subr.bf16.mxu0 0
  %142 = vmatpush1.bf16.msra.mxu0 %v117
  %143 = vmatprep.subr.bf16.mxu0 0
  %144 = vmatpush1.bf16.msra.mxu0 %v116
  %145 = vmatprep.subr.bf16.mxu0 0
  %146 = vmatpush1.bf16.msra.mxu0 %v115
  %147 = vmatprep.subr.bf16.mxu0 0
  %148 = vmatpush2.bf16.msra.mxu0 0
  %149 = vmatprep.subr.bf16.mxu0 0
  %150 = vmatpush2.bf16.msra.mxu0 0
  %151 = vmatprep.subr.bf16.mxu0 0
  %152 = vmatpush2.bf16.msra.mxu0 0
  %153 = vmatprep.subr.bf16.mxu0 0
  %154 = vmatpush2.bf16.msra.mxu0 0
  %155 = vmatprep.subr.bf16.mxu0 0
  %156 = vmatpush2.bf16.msra.mxu0 0
  %157 = vmatprep.subr.bf16.mxu0 0
  %158 = vmatpush2.bf16.msra.mxu0 0
  %159 = vmatprep.subr.bf16.mxu0 0
  %160 = vmatpush2.bf16.msra.mxu0 0
  %161 = vmatprep.subr.bf16.mxu0 0
  %162 = vmatpush2.bf16.msra.mxu0 0
  %163 = vmatprep.mubr.bf16.mxu0 0
  %164 = vmatmul.mubr.bf16.gmra.mxu0 %v75
  %v165 = vpop.f32.mrf.mxu0
  %v166 = vadd.f32 0.0, %v165
  %v167 = vpop.f32.mrf.mxu0
  %v168 = vpop.f32.mrf.mxu0
  %v169 = vadd.f32 0.0, %v168
  %v170 = vpop.f32.mrf.mxu0
  %171 = vmatprep.mubr.bf16.mxu0 0
  %172 = vmatmul.mubr.bf16.gmra.mxu0 %v76
  %v173 = vpop.f32.mrf.mxu0
  %v174 = vadd.f32 0.0, %v173
  %v175 = vpop.f32.mrf.mxu0
  %v176 = vpop.f32.mrf.mxu0
  %v177 = vadd.f32 0.0, %v176
  %v178 = vpop.f32.mrf.mxu0
  %179 = vmatprep.mubr.bf16.mxu0 0
  %180 = vmatmul.mubr.bf16.gmra.mxu0 %v77
  %v181 = vpop.f32.mrf.mxu0
  %v182 = vadd.f32 0.0, %v181
  %v183 = vpop.f32.mrf.mxu0
  %v184 = vpop.f32.mrf.mxu0
  %v185 = vadd.f32 0.0, %v184
  %v186 = vpop.f32.mrf.mxu0
  %187 = vmatprep.mubr.bf16.mxu0 0
  %188 = vmatmul.mubr.bf16.gmra.mxu0 %v78
  %v189 = vpop.f32.mrf.mxu0
  %v190 = vadd.f32 0.0, %v189
  %v191 = vpop.f32.mrf.mxu0
  %v192 = vpop.f32.mrf.mxu0
  %v193 = vadd.f32 0.0, %v192
  %v194 = vpop.f32.mrf.mxu0
  %195 = vdwg.mxu0
  %v196 = vadd.f32 %v27, %v166
  %v197 = vadd.f32 %v28, %v169
  %v198 = vadd.f32 %v29, %v174
  %v199 = vadd.f32 %v30, %v177
  %v200 = vadd.f32 %v31, %v182
  %v201 = vadd.f32 %v32, %v185
  %v202 = vadd.f32 %v33, %v190
  %v203 = vadd.f32 %v34, %v193
  %204 = vst [vmem:[#allocation2] sm:$0xff] %v196
  %205 = vst [vmem:[#allocation2 + $0x8] sm:$0xff] %v197
  %206 = vst [vmem:[#allocation2 + $0x10] sm:$0xff] %v198
  %207 = vst [vmem:[#allocation2 + $0x18] sm:$0xff] %v199
  %208 = vst [vmem:[#allocation2 + $0x20] sm:$0xff] %v200
  %209 = vst [vmem:[#allocation2 + $0x28] sm:$0xff] %v201
  %210 = vst [vmem:[#allocation2 + $0x30] sm:$0xff] %v202
  %211 = vst [vmem:[#allocation2 + $0x38] sm:$0xff] %v203
  // Predicated region
  $region18: #{la_unisage_forward.8} parent=0 // pred_check
    %p212 = pneg %p15
  $region19: #{la_unisage_forward.8} parent=0 // pred_check_branch
    %214 = sbr.rel (%p212) target = $region21
  $region20: #{la_unisage_forward.8} parent=0 // pred_region
    %v215 = vld [vmem:[#allocation2] sm:$0xff]
    %v216 = vld [vmem:[#allocation2 + $0x8] sm:$0xff]
    %v217 = vld [vmem:[#allocation2 + $0x10] sm:$0xff]
    %v218 = vld [vmem:[#allocation2 + $0x18] sm:$0xff]
    %v219 = vld [vmem:[#allocation2 + $0x20] sm:$0xff]
    %v220 = vld [vmem:[#allocation2 + $0x28] sm:$0xff]
    %v221 = vld [vmem:[#allocation2 + $0x30] sm:$0xff]
    %v222 = vld [vmem:[#allocation2 + $0x38] sm:$0xff]
    %v223 = vld [vmem:[%s2] sm:$0x1]
    %v225 = vlaneseq
    %v226 = vshrl.u32 %v225, 7
    %v227 = vsub.s32 0, %v226
    %v228 = vrot.slane %v223, %v227
    %v230 = vadd.f32 %v215, %v228
    %v231 = vadd.f32 %v216, %v228
    %v232 = vadd.f32 %v217, %v228
    %v233 = vadd.f32 %v218, %v228
    %v234 = vadd.f32 %v219, %v228
    %v235 = vadd.f32 %v220, %v228
    %v236 = vadd.f32 %v221, %v228
    %v237 = vadd.f32 %v222, %v228
    %v238 = vpack.c.bf16 %v231, %v230
    %v239 = vpack.c.bf16 %v233, %v232
    %v240 = vpack.c.bf16 %v235, %v234
    %v241 = vpack.c.bf16 %v237, %v236
    %v246 = vunpack.c.l.b16 %v238
    %v247 = vunpack.c.h.b16 %v238
    %v248 = vunpack.c.l.b16 %v239
    %v249 = vunpack.c.h.b16 %v239
    %v250 = vunpack.c.l.b16 %v240
    %v251 = vunpack.c.h.b16 %v240
    %v252 = vunpack.c.l.b16 %v241
    %v253 = vunpack.c.h.b16 %v241
    %v254 = vpack.c.b16 %v246, %v246
    %v255 = vpack.c.b16 %v247, %v247
    %v256 = vpack.c.b16 %v248, %v248
    %v257 = vpack.c.b16 %v249, %v249
    %v258 = vpack.c.b16 %v250, %v250
    %v259 = vpack.c.b16 %v251, %v251
    %v260 = vpack.c.b16 %v252, %v252
    %v261 = vpack.c.b16 %v253, %v253
    %270 = vst [vmem:[%s3] sm:$0xf] %v254
    %271 = vst [vmem:[%s3 + $0x4] sm:$0xf] %v255
    %272 = vst [vmem:[%s3 + $0x8] sm:$0xf] %v256
    %273 = vst [vmem:[%s3 + $0xc] sm:$0xf] %v257
    %274 = vst [vmem:[%s3 + $0x10] sm:$0xf] %v258
    %275 = vst [vmem:[%s3 + $0x14] sm:$0xf] %v259
    %276 = vst [vmem:[%s3 + $0x18] sm:$0xf] %v260
    %277 = vst [vmem:[%s3 + $0x1c] sm:$0xf] %v261
  $region21: #{la_unisage_forward.8} parent=0 // pred_fallthru
    _
  // Predicated region
  $region22: #{la_unisage_forward.8} parent=0 // pred_check
    _
  $region23: #{la_unisage_forward.8} parent=0 // pred_check_branch
    %279 = sbr.rel (0) target = $region25
  $region24: #{la_unisage_forward.8} parent=0 // pred_region
    _
  $region25: #{la_unisage_forward.8} parent=0 // pred_fallthru
    _
  // Predicated region
  $region26: #{la_unisage_forward.8} parent=0 // pred_check
    _
  $region27: #{la_unisage_forward.8} parent=0 // pred_check_branch
    %281 = sbr.rel (0) target = $region29
  $region28: #{la_unisage_forward.8} parent=0 // pred_region
    _
  $region29: #{la_unisage_forward.8} parent=0 // pred_fallthru
    _

// kernel: la_unisage_forward.9
$region0: #{la_unisage_forward.9}
  #allocation0 [shape = 'u32[]', space=smem, size = 0x4, offset = 0x4, fixed_abs, tag = 'smem constant byte address 0x4 - core index']
  #allocation1 [shape = 'u32[144,128]{1,0:T(1,128)}', space=vmem, size = 0x12000, scoped, tag = 'internal scratch']
  #allocation2 [shape = 'f32[128,128]{1,0:T(8,128)}', space=vmem, size = 0x10000, scoped, tag = 'scratch operand']
  %s0 = inlined_call_operand.vmem [shape: bf16[128,128], index: 0, kind: input, shape index: {}]
  %s1 = inlined_call_operand.vmem [shape: bf16[128,128], index: 1, kind: input, shape index: {}]
  %s2 = inlined_call_operand.vmem [shape: f32[128,1], index: 2, kind: input, shape index: {}]
  %s3 = inlined_call_operand.vmem [shape: bf16[128,128], index: 3, kind: output, shape index: {}]
  %s4 = sld [smem:[#allocation0]]
  $region30: #{la_unisage_forward.9} parent=0
    _
  %s6 = ssub.s32 1, %s4
  %s7 = scalar_select 0, %s6, %s4
  // Predicated region
  $region2: #{la_unisage_forward.9} parent=0 // pred_check
    _
  $region3: #{la_unisage_forward.9} parent=0 // pred_check_branch
    %9 = sbr.rel (0) target = $region5
  $region4: #{la_unisage_forward.9} parent=0 // pred_region
    _
  $region5: #{la_unisage_forward.9} parent=0 // pred_fallthru
    _
  // Predicated region
  $region6: #{la_unisage_forward.9} parent=0 // pred_check
    _
  $region7: #{la_unisage_forward.9} parent=0 // pred_check_branch
    %11 = sbr.rel (0) target = $region9
  $region8: #{la_unisage_forward.9} parent=0 // pred_region
    _
  $region9: #{la_unisage_forward.9} parent=0 // pred_fallthru
    _
  // Predicated region
  $region10: #{la_unisage_forward.9} parent=0 // pred_check
    _
  $region11: #{la_unisage_forward.9} parent=0 // pred_check_branch
    %13 = sbr.rel (0) target = $region13
  $region12: #{la_unisage_forward.9} parent=0 // pred_region
    _
  $region13: #{la_unisage_forward.9} parent=0 // pred_fallthru
    _
  %p15 = scmp.eq.s32.totalorder 0, 0
  // Predicated region
  $region14: #{la_unisage_forward.9} parent=0 // pred_check
    %p16 = pneg %p15
  $region15: #{la_unisage_forward.9} parent=0 // pred_check_branch
    %18 = sbr.rel (%p16) target = $region17
  $region16: #{la_unisage_forward.9} parent=0 // pred_region
    %19 = vst [vmem:[#allocation2] sm:$0xff] 0.0
    %20 = vst [vmem:[#allocation2 + $0x8] sm:$0xff] 0.0
    %21 = vst [vmem:[#allocation2 + $0x10] sm:$0xff] 0.0
    %22 = vst [vmem:[#allocation2 + $0x18] sm:$0xff] 0.0
    %23 = vst [vmem:[#allocation2 + $0x20] sm:$0xff] 0.0
    %24 = vst [vmem:[#allocation2 + $0x28] sm:$0xff] 0.0
    %25 = vst [vmem:[#allocation2 + $0x30] sm:$0xff] 0.0
    %26 = vst [vmem:[#allocation2 + $0x38] sm:$0xff] 0.0
    %27 = vst [vmem:[#allocation2 + $0x40] sm:$0xff] 0.0
    %28 = vst [vmem:[#allocation2 + $0x48] sm:$0xff] 0.0
    %29 = vst [vmem:[#allocation2 + $0x50] sm:$0xff] 0.0
    %30 = vst [vmem:[#allocation2 + $0x58] sm:$0xff] 0.0
    %31 = vst [vmem:[#allocation2 + $0x60] sm:$0xff] 0.0
    %32 = vst [vmem:[#allocation2 + $0x68] sm:$0xff] 0.0
    %33 = vst [vmem:[#allocation2 + $0x70] sm:$0xff] 0.0
    %34 = vst [vmem:[#allocation2 + $0x78] sm:$0xff] 0.0
  $region17: #{la_unisage_forward.9} parent=0 // pred_fallthru
    _
  %v35 = vld [vmem:[#allocation2] sm:$0xff]
  %v36 = vld [vmem:[#allocation2 + $0x8] sm:$0xff]
  %v37 = vld [vmem:[#allocation2 + $0x10] sm:$0xff]
  %v38 = vld [vmem:[#allocation2 + $0x18] sm:$0xff]
  %v39 = vld [vmem:[#allocation2 + $0x20] sm:$0xff]
  %v40 = vld [vmem:[#allocation2 + $0x28] sm:$0xff]
  %v41 = vld [vmem:[#allocation2 + $0x30] sm:$0xff]
  %v42 = vld [vmem:[#allocation2 + $0x38] sm:$0xff]
  %v43 = vld [vmem:[#allocation2 + $0x40] sm:$0xff]
  %v44 = vld [vmem:[#allocation2 + $0x48] sm:$0xff]
  %v45 = vld [vmem:[#allocation2 + $0x50] sm:$0xff]
  %v46 = vld [vmem:[#allocation2 + $0x58] sm:$0xff]
  %v47 = vld [vmem:[#allocation2 + $0x60] sm:$0xff]
  %v48 = vld [vmem:[#allocation2 + $0x68] sm:$0xff]
  %v49 = vld [vmem:[#allocation2 + $0x70] sm:$0xff]
  %v50 = vld [vmem:[#allocation2 + $0x78] sm:$0xff]
  %v51 = vld [vmem:[%s0] sm:$0xf]
  %v52 = vld [vmem:[%s0 + $0x4] sm:$0xf]
  %v53 = vld [vmem:[%s0 + $0x8] sm:$0xf]
  %v54 = vld [vmem:[%s0 + $0xc] sm:$0xf]
  %v55 = vld [vmem:[%s0 + $0x10] sm:$0xf]
  %v56 = vld [vmem:[%s0 + $0x14] sm:$0xf]
  %v57 = vld [vmem:[%s0 + $0x18] sm:$0xf]
  %v58 = vld [vmem:[%s0 + $0x1c] sm:$0xf]
  %v59 = vld [vmem:[%s0 + $0x20] sm:$0xf]
  %v60 = vld [vmem:[%s0 + $0x24] sm:$0xf]
  %v61 = vld [vmem:[%s0 + $0x28] sm:$0xf]
  %v62 = vld [vmem:[%s0 + $0x2c] sm:$0xf]
  %v63 = vld [vmem:[%s0 + $0x30] sm:$0xf]
  %v64 = vld [vmem:[%s0 + $0x34] sm:$0xf]
  %v65 = vld [vmem:[%s0 + $0x38] sm:$0xf]
  %v66 = vld [vmem:[%s0 + $0x3c] sm:$0xf]
  %v67 = vld [vmem:[%s1] sm:$0xf]
  %v68 = vld [vmem:[%s1 + $0x4] sm:$0xf]
  %v69 = vld [vmem:[%s1 + $0x8] sm:$0xf]
  %v70 = vld [vmem:[%s1 + $0xc] sm:$0xf]
  %v71 = vld [vmem:[%s1 + $0x10] sm:$0xf]
  %v72 = vld [vmem:[%s1 + $0x14] sm:$0xf]
  %v73 = vld [vmem:[%s1 + $0x18] sm:$0xf]
  %v74 = vld [vmem:[%s1 + $0x1c] sm:$0xf]
  %v75 = vld [vmem:[%s1 + $0x20] sm:$0xf]
  %v76 = vld [vmem:[%s1 + $0x24] sm:$0xf]
  %v77 = vld [vmem:[%s1 + $0x28] sm:$0xf]
  %v78 = vld [vmem:[%s1 + $0x2c] sm:$0xf]
  %v79 = vld [vmem:[%s1 + $0x30] sm:$0xf]
  %v80 = vld [vmem:[%s1 + $0x34] sm:$0xf]
  %v81 = vld [vmem:[%s1 + $0x38] sm:$0xf]
  %v82 = vld [vmem:[%s1 + $0x3c] sm:$0xf]
  %v99 = vunpack.c.l.b16 %v51
  %v100 = vunpack.c.l.b16 %v52
  %v101 = vunpack.c.l.b16 %v53
  %v102 = vunpack.c.l.b16 %v54
  %v103 = vunpack.c.l.b16 %v55
  %v104 = vunpack.c.l.b16 %v56
  %v105 = vunpack.c.l.b16 %v57
  %v106 = vunpack.c.l.b16 %v58
  %v107 = vunpack.c.l.b16 %v59
  %v108 = vunpack.c.l.b16 %v60
  %v109 = vunpack.c.l.b16 %v61
  %v110 = vunpack.c.l.b16 %v62
  %v111 = vunpack.c.l.b16 %v63
  %v112 = vunpack.c.l.b16 %v64
  %v113 = vunpack.c.l.b16 %v65
  %v114 = vunpack.c.l.b16 %v66
  %v115 = vpack.c.b16 %v100, %v99
  %v116 = vpack.c.b16 %v102, %v101
  %v117 = vpack.c.b16 %v104, %v103
  %v118 = vpack.c.b16 %v106, %v105
  %v119 = vpack.c.b16 %v108, %v107
  %v120 = vpack.c.b16 %v110, %v109
  %v121 = vpack.c.b16 %v112, %v111
  %v122 = vpack.c.b16 %v114, %v113
  %v147 = vunpack.c.l.b16 %v67
  %v148 = vunpack.c.l.b16 %v68
  %v149 = vunpack.c.l.b16 %v69
  %v150 = vunpack.c.l.b16 %v70
  %v151 = vunpack.c.l.b16 %v71
  %v152 = vunpack.c.l.b16 %v72
  %v153 = vunpack.c.l.b16 %v73
  %v154 = vunpack.c.l.b16 %v74
  %v155 = vunpack.c.l.b16 %v75
  %v156 = vunpack.c.l.b16 %v76
  %v157 = vunpack.c.l.b16 %v77
  %v158 = vunpack.c.l.b16 %v78
  %v159 = vunpack.c.l.b16 %v79
  %v160 = vunpack.c.l.b16 %v80
  %v161 = vunpack.c.l.b16 %v81
  %v162 = vunpack.c.l.b16 %v82
  %v163 = vpack.c.b16 %v148, %v147
  %v164 = vpack.c.b16 %v150, %v149
  %v165 = vpack.c.b16 %v152, %v151
  %v166 = vpack.c.b16 %v154, %v153
  %v167 = vpack.c.b16 %v156, %v155
  %v168 = vpack.c.b16 %v158, %v157
  %v169 = vpack.c.b16 %v160, %v159
  %v170 = vpack.c.b16 %v162, %v161
  %179 = vmatprep.subr.bf16.mxu0 0
  %180 = vmatpush1.bf16.msra.mxu0 %v170
  %181 = vmatprep.subr.bf16.mxu0 0
  %182 = vmatpush1.bf16.msra.mxu0 %v169
  %183 = vmatprep.subr.bf16.mxu0 0
  %184 = vmatpush1.bf16.msra.mxu0 %v168
  %185 = vmatprep.subr.bf16.mxu0 0
  %186 = vmatpush1.bf16.msra.mxu0 %v167
  %187 = vmatprep.subr.bf16.mxu0 0
  %188 = vmatpush1.bf16.msra.mxu0 %v166
  %189 = vmatprep.subr.bf16.mxu0 0
  %190 = vmatpush1.bf16.msra.mxu0 %v165
  %191 = vmatprep.subr.bf16.mxu0 0
  %192 = vmatpush1.bf16.msra.mxu0 %v164
  %193 = vmatprep.subr.bf16.mxu0 0
  %194 = vmatpush1.bf16.msra.mxu0 %v163
  %195 = vmatprep.subr.bf16.mxu0 0
  %196 = vmatpush2.bf16.msra.mxu0 0
  %197 = vmatprep.subr.bf16.mxu0 0
  %198 = vmatpush2.bf16.msra.mxu0 0
  %199 = vmatprep.subr.bf16.mxu0 0
  %200 = vmatpush2.bf16.msra.mxu0 0
  %201 = vmatprep.subr.bf16.mxu0 0
  %202 = vmatpush2.bf16.msra.mxu0 0
  %203 = vmatprep.subr.bf16.mxu0 0
  %204 = vmatpush2.bf16.msra.mxu0 0
  %205 = vmatprep.subr.bf16.mxu0 0
  %206 = vmatpush2.bf16.msra.mxu0 0
  %207 = vmatprep.subr.bf16.mxu0 0
  %208 = vmatpush2.bf16.msra.mxu0 0
  %209 = vmatprep.subr.bf16.mxu0 0
  %210 = vmatpush2.bf16.msra.mxu0 0
  %211 = vmatprep.mubr.bf16.mxu0 0
  %212 = vmatmul.mubr.bf16.gmra.mxu0 %v115
  %v213 = vpop.f32.mrf.mxu0
  %v214 = vadd.f32 0.0, %v213
  %v215 = vpop.f32.mrf.mxu0
  %v216 = vpop.f32.mrf.mxu0
  %v217 = vadd.f32 0.0, %v216
  %v218 = vpop.f32.mrf.mxu0
  %219 = vmatprep.mubr.bf16.mxu0 0
  %220 = vmatmul.mubr.bf16.gmra.mxu0 %v116
  %v221 = vpop.f32.mrf.mxu0
  %v222 = vadd.f32 0.0, %v221
  %v223 = vpop.f32.mrf.mxu0
  %v224 = vpop.f32.mrf.mxu0
  %v225 = vadd.f32 0.0, %v224
  %v226 = vpop.f32.mrf.mxu0
  %227 = vmatprep.mubr.bf16.mxu0 0
  %228 = vmatmul.mubr.bf16.gmra.mxu0 %v117
  %v229 = vpop.f32.mrf.mxu0
  %v230 = vadd.f32 0.0, %v229
  %v231 = vpop.f32.mrf.mxu0
  %v232 = vpop.f32.mrf.mxu0
  %v233 = vadd.f32 0.0, %v232
  %v234 = vpop.f32.mrf.mxu0
  %235 = vmatprep.mubr.bf16.mxu0 0
  %236 = vmatmul.mubr.bf16.gmra.mxu0 %v118
  %v237 = vpop.f32.mrf.mxu0
  %v238 = vadd.f32 0.0, %v237
  %v239 = vpop.f32.mrf.mxu0
  %v240 = vpop.f32.mrf.mxu0
  %v241 = vadd.f32 0.0, %v240
  %v242 = vpop.f32.mrf.mxu0
  %243 = vmatprep.mubr.bf16.mxu0 0
  %244 = vmatmul.mubr.bf16.gmra.mxu0 %v119
  %v245 = vpop.f32.mrf.mxu0
  %v246 = vadd.f32 0.0, %v245
  %v247 = vpop.f32.mrf.mxu0
  %v248 = vpop.f32.mrf.mxu0
  %v249 = vadd.f32 0.0, %v248
  %v250 = vpop.f32.mrf.mxu0
  %251 = vmatprep.mubr.bf16.mxu0 0
  %252 = vmatmul.mubr.bf16.gmra.mxu0 %v120
  %v253 = vpop.f32.mrf.mxu0
  %v254 = vadd.f32 0.0, %v253
  %v255 = vpop.f32.mrf.mxu0
  %v256 = vpop.f32.mrf.mxu0
  %v257 = vadd.f32 0.0, %v256
  %v258 = vpop.f32.mrf.mxu0
  %259 = vmatprep.mubr.bf16.mxu0 0
  %260 = vmatmul.mubr.bf16.gmra.mxu0 %v121
  %v261 = vpop.f32.mrf.mxu0
  %v262 = vadd.f32 0.0, %v261
  %v263 = vpop.f32.mrf.mxu0
  %v264 = vpop.f32.mrf.mxu0
  %v265 = vadd.f32 0.0, %v264
  %v266 = vpop.f32.mrf.mxu0
  %267 = vmatprep.mubr.bf16.mxu0 0
  %268 = vmatmul.mubr.bf16.gmra.mxu0 %v122
  %v269 = vpop.f32.mrf.mxu0
  %v270 = vadd.f32 0.0, %v269
  %v271 = vpop.f32.mrf.mxu0
  %v272 = vpop.f32.mrf.mxu0
  %v273 = vadd.f32 0.0, %v272
  %v274 = vpop.f32.mrf.mxu0
  %275 = vdwg.mxu0
  %v276 = vadd.f32 %v35, %v214
  %v277 = vadd.f32 %v36, %v217
  %v278 = vadd.f32 %v37, %v222
  %v279 = vadd.f32 %v38, %v225
  %v280 = vadd.f32 %v39, %v230
  %v281 = vadd.f32 %v40, %v233
  %v282 = vadd.f32 %v41, %v238
  %v283 = vadd.f32 %v42, %v241
  %v284 = vadd.f32 %v43, %v246
  %v285 = vadd.f32 %v44, %v249
  %v286 = vadd.f32 %v45, %v254
  %v287 = vadd.f32 %v46, %v257
  %v288 = vadd.f32 %v47, %v262
  %v289 = vadd.f32 %v48, %v265
  %v290 = vadd.f32 %v49, %v270
  %v291 = vadd.f32 %v50, %v273
  %292 = vst [vmem:[#allocation2] sm:$0xff] %v276
  %293 = vst [vmem:[#allocation2 + $0x8] sm:$0xff] %v277
  %294 = vst [vmem:[#allocation2 + $0x10] sm:$0xff] %v278
  %295 = vst [vmem:[#allocation2 + $0x18] sm:$0xff] %v279
  %296 = vst [vmem:[#allocation2 + $0x20] sm:$0xff] %v280
  %297 = vst [vmem:[#allocation2 + $0x28] sm:$0xff] %v281
  %298 = vst [vmem:[#allocation2 + $0x30] sm:$0xff] %v282
  %299 = vst [vmem:[#allocation2 + $0x38] sm:$0xff] %v283
  %300 = vst [vmem:[#allocation2 + $0x40] sm:$0xff] %v284
  %301 = vst [vmem:[#allocation2 + $0x48] sm:$0xff] %v285
  %302 = vst [vmem:[#allocation2 + $0x50] sm:$0xff] %v286
  %303 = vst [vmem:[#allocation2 + $0x58] sm:$0xff] %v287
  %304 = vst [vmem:[#allocation2 + $0x60] sm:$0xff] %v288
  %305 = vst [vmem:[#allocation2 + $0x68] sm:$0xff] %v289
  %306 = vst [vmem:[#allocation2 + $0x70] sm:$0xff] %v290
  %307 = vst [vmem:[#allocation2 + $0x78] sm:$0xff] %v291
  // Predicated region
  $region18: #{la_unisage_forward.9} parent=0 // pred_check
    %p308 = pneg %p15
  $region19: #{la_unisage_forward.9} parent=0 // pred_check_branch
    %310 = sbr.rel (%p308) target = $region21
  $region20: #{la_unisage_forward.9} parent=0 // pred_region
    %v311 = vld [vmem:[#allocation2] sm:$0xff]
    %v312 = vld [vmem:[#allocation2 + $0x8] sm:$0xff]
    %v313 = vld [vmem:[#allocation2 + $0x10] sm:$0xff]
    %v314 = vld [vmem:[#allocation2 + $0x18] sm:$0xff]
    %v315 = vld [vmem:[#allocation2 + $0x20] sm:$0xff]
    %v316 = vld [vmem:[#allocation2 + $0x28] sm:$0xff]
    %v317 = vld [vmem:[#allocation2 + $0x30] sm:$0xff]
    %v318 = vld [vmem:[#allocation2 + $0x38] sm:$0xff]
    %v319 = vld [vmem:[#allocation2 + $0x40] sm:$0xff]
    %v320 = vld [vmem:[#allocation2 + $0x48] sm:$0xff]
    %v321 = vld [vmem:[#allocation2 + $0x50] sm:$0xff]
    %v322 = vld [vmem:[#allocation2 + $0x58] sm:$0xff]
    %v323 = vld [vmem:[#allocation2 + $0x60] sm:$0xff]
    %v324 = vld [vmem:[#allocation2 + $0x68] sm:$0xff]
    %v325 = vld [vmem:[#allocation2 + $0x70] sm:$0xff]
    %v326 = vld [vmem:[#allocation2 + $0x78] sm:$0xff]
    %v327 = vld [vmem:[%s2] sm:$0xff]
    %v328 = vld [vmem:[%s2 + $0x8] sm:$0xff]
    %v329 = vld [vmem:[%s2 + $0x10] sm:$0xff]
    %v330 = vld [vmem:[%s2 + $0x18] sm:$0xff]
    %v331 = vld [vmem:[%s2 + $0x20] sm:$0xff]
    %v332 = vld [vmem:[%s2 + $0x28] sm:$0xff]
    %v333 = vld [vmem:[%s2 + $0x30] sm:$0xff]
    %v334 = vld [vmem:[%s2 + $0x38] sm:$0xff]
    %v335 = vld [vmem:[%s2 + $0x40] sm:$0xff]
    %v336 = vld [vmem:[%s2 + $0x48] sm:$0xff]
    %v337 = vld [vmem:[%s2 + $0x50] sm:$0xff]
    %v338 = vld [vmem:[%s2 + $0x58] sm:$0xff]
    %v339 = vld [vmem:[%s2 + $0x60] sm:$0xff]
    %v340 = vld [vmem:[%s2 + $0x68] sm:$0xff]
    %v341 = vld [vmem:[%s2 + $0x70] sm:$0xff]
    %v342 = vld [vmem:[%s2 + $0x78] sm:$0xff]
    %344 = vset.pattern.permute.xlu0 0
    %345 = vperm.xlu0 %344, %v327
    %v346 = vpop.permute.xlu0 %345
    %349 = vset.pattern.permute.xlu0 0
    %350 = vperm.xlu0 %349, %v328
    %v351 = vpop.permute.xlu0 %350
    %354 = vset.pattern.permute.xlu0 0
    %355 = vperm.xlu0 %354, %v329
    %v356 = vpop.permute.xlu0 %355
    %359 = vset.pattern.permute.xlu0 0
    %360 = vperm.xlu0 %359, %v330
    %v361 = vpop.permute.xlu0 %360
    %364 = vset.pattern.permute.xlu0 0
    %365 = vperm.xlu0 %364, %v331
    %v366 = vpop.permute.xlu0 %365
    %369 = vset.pattern.permute.xlu0 0
    %370 = vperm.xlu0 %369, %v332
    %v371 = vpop.permute.xlu0 %370
    %374 = vset.pattern.permute.xlu0 0
    %375 = vperm.xlu0 %374, %v333
    %v376 = vpop.permute.xlu0 %375
    %379 = vset.pattern.permute.xlu0 0
    %380 = vperm.xlu0 %379, %v334
    %v381 = vpop.permute.xlu0 %380
    %384 = vset.pattern.permute.xlu0 0
    %385 = vperm.xlu0 %384, %v335
    %v386 = vpop.permute.xlu0 %385
    %389 = vset.pattern.permute.xlu0 0
    %390 = vperm.xlu0 %389, %v336
    %v391 = vpop.permute.xlu0 %390
    %394 = vset.pattern.permute.xlu0 0
    %395 = vperm.xlu0 %394, %v337
    %v396 = vpop.permute.xlu0 %395
    %399 = vset.pattern.permute.xlu0 0
    %400 = vperm.xlu0 %399, %v338
    %v401 = vpop.permute.xlu0 %400
    %404 = vset.pattern.permute.xlu0 0
    %405 = vperm.xlu0 %404, %v339
    %v406 = vpop.permute.xlu0 %405
    %409 = vset.pattern.permute.xlu0 0
    %410 = vperm.xlu0 %409, %v340
    %v411 = vpop.permute.xlu0 %410
    %414 = vset.pattern.permute.xlu0 0
    %415 = vperm.xlu0 %414, %v341
    %v416 = vpop.permute.xlu0 %415
    %419 = vset.pattern.permute.xlu0 0
    %420 = vperm.xlu0 %419, %v342
    %v421 = vpop.permute.xlu0 %420
    %v423 = vmul.f32 %v311, %v346
    %v424 = vmul.f32 %v312, %v351
    %v425 = vmul.f32 %v313, %v356
    %v426 = vmul.f32 %v314, %v361
    %v427 = vmul.f32 %v315, %v366
    %v428 = vmul.f32 %v316, %v371
    %v429 = vmul.f32 %v317, %v376
    %v430 = vmul.f32 %v318, %v381
    %v431 = vmul.f32 %v319, %v386
    %v432 = vmul.f32 %v320, %v391
    %v433 = vmul.f32 %v321, %v396
    %v434 = vmul.f32 %v322, %v401
    %v435 = vmul.f32 %v323, %v406
    %v436 = vmul.f32 %v324, %v411
    %v437 = vmul.f32 %v325, %v416
    %v438 = vmul.f32 %v326, %v421
    %v439 = vpack.c.bf16 %v424, %v423
    %v440 = vpack.c.bf16 %v426, %v425
    %v441 = vpack.c.bf16 %v428, %v427
    %v442 = vpack.c.bf16 %v430, %v429
    %v443 = vpack.c.bf16 %v432, %v431
    %v444 = vpack.c.bf16 %v434, %v433
    %v445 = vpack.c.bf16 %v436, %v435
    %v446 = vpack.c.bf16 %v438, %v437
    %v455 = vunpack.c.l.b16 %v439
    %v456 = vunpack.c.h.b16 %v439
    %v457 = vunpack.c.l.b16 %v440
    %v458 = vunpack.c.h.b16 %v440
    %v459 = vunpack.c.l.b16 %v441
    %v460 = vunpack.c.h.b16 %v441
    %v461 = vunpack.c.l.b16 %v442
    %v462 = vunpack.c.h.b16 %v442
    %v463 = vunpack.c.l.b16 %v443
    %v464 = vunpack.c.h.b16 %v443
    %v465 = vunpack.c.l.b16 %v444
    %v466 = vunpack.c.h.b16 %v444
    %v467 = vunpack.c.l.b16 %v445
    %v468 = vunpack.c.h.b16 %v445
    %v469 = vunpack.c.l.b16 %v446
    %v470 = vunpack.c.h.b16 %v446
    %v471 = vpack.c.b16 %v455, %v455
    %v472 = vpack.c.b16 %v456, %v456
    %v473 = vpack.c.b16 %v457, %v457
    %v474 = vpack.c.b16 %v458, %v458
    %v475 = vpack.c.b16 %v459, %v459
    %v476 = vpack.c.b16 %v460, %v460
    %v477 = vpack.c.b16 %v461, %v461
    %v478 = vpack.c.b16 %v462, %v462
    %v479 = vpack.c.b16 %v463, %v463
    %v480 = vpack.c.b16 %v464, %v464
    %v481 = vpack.c.b16 %v465, %v465
    %v482 = vpack.c.b16 %v466, %v466
    %v483 = vpack.c.b16 %v467, %v467
    %v484 = vpack.c.b16 %v468, %v468
    %v485 = vpack.c.b16 %v469, %v469
    %v486 = vpack.c.b16 %v470, %v470
    %503 = vst [vmem:[%s3] sm:$0xf] %v471
    %504 = vst [vmem:[%s3 + $0x4] sm:$0xf] %v472
    %505 = vst [vmem:[%s3 + $0x8] sm:$0xf] %v473
    %506 = vst [vmem:[%s3 + $0xc] sm:$0xf] %v474
    %507 = vst [vmem:[%s3 + $0x10] sm:$0xf] %v475
    %508 = vst [vmem:[%s3 + $0x14] sm:$0xf] %v476
    %509 = vst [vmem:[%s3 + $0x18] sm:$0xf] %v477
    %510 = vst [vmem:[%s3 + $0x1c] sm:$0xf] %v478
    %511 = vst [vmem:[%s3 + $0x20] sm:$0xf] %v479
    %512 = vst [vmem:[%s3 + $0x24] sm:$0xf] %v480
    %513 = vst [vmem:[%s3 + $0x28] sm:$0xf] %v481
    %514 = vst [vmem:[%s3 + $0x2c] sm:$0xf] %v482
    %515 = vst [vmem:[%s3 + $0x30] sm:$0xf] %v483
    %516 = vst [vmem:[%s3 + $0x34] sm:$0xf] %v484
    %517 = vst [vmem:[%s3 + $0x38] sm:$0xf] %v485
    %518 = vst [vmem:[%s3 + $0x3c] sm:$0xf] %v486
  $region21: #{la_unisage_forward.9} parent=0 // pred_fallthru
    _
  // Predicated region
  $region22: #{la_unisage_forward.9} parent=0 // pred_check
    _
  $region23: #{la_unisage_forward.9} parent=0 // pred_check_branch
    %520 = sbr.rel (0) target = $region25
  $region24: #{la_unisage_forward.9} parent=0 // pred_region
    _
  $region25: #{la_unisage_forward.9} parent=0 // pred_fallthru
    _
  // Predicated region
  $region26: #{la_unisage_forward.9} parent=0 // pred_check
    _
  $region27: #{la_unisage_forward.9} parent=0 // pred_check_branch
    %522 = sbr.rel (0) target = $region29
  $region28: #{la_unisage_forward.9} parent=0 // pred_region
    _
  $region29: #{la_unisage_forward.9} parent=0 // pred_fallthru
    _

// kernel: la_unisage_forward.13
$region0: #{la_unisage_forward.13}
  #allocation0 [shape = 'u32[]', space=smem, size = 0x4, offset = 0x4, fixed_abs, tag = 'smem constant byte address 0x4 - core index']
  #allocation1 [shape = 'u32[144,128]{1,0:T(1,128)}', space=vmem, size = 0x12000, scoped, tag = 'internal scratch']
  #allocation2 [shape = 'f32[128,128]{1,0:T(8,128)}', space=vmem, size = 0x10000, scoped, tag = 'scratch operand']
  %s0 = inlined_call_operand.vmem [shape: bf16[128,128], index: 0, kind: input, shape index: {}]
  %s1 = inlined_call_operand.vmem [shape: bf16[128,128], index: 1, kind: input, shape index: {}]
  %s2 = inlined_call_operand.vmem [shape: bf16[128,128], index: 2, kind: input, shape index: {}]
  %s3 = inlined_call_operand.vmem [shape: f32[128,128], index: 3, kind: output, shape index: {}]
  %s4 = sld [smem:[#allocation0]]
  $region30: #{la_unisage_forward.13} parent=0
    _
  %s6 = ssub.s32 1, %s4
  %s7 = scalar_select 0, %s6, %s4
  // Predicated region
  $region2: #{la_unisage_forward.13} parent=0 // pred_check
    _
  $region3: #{la_unisage_forward.13} parent=0 // pred_check_branch
    %9 = sbr.rel (0) target = $region5
  $region4: #{la_unisage_forward.13} parent=0 // pred_region
    _
  $region5: #{la_unisage_forward.13} parent=0 // pred_fallthru
    _
  // Predicated region
  $region6: #{la_unisage_forward.13} parent=0 // pred_check
    _
  $region7: #{la_unisage_forward.13} parent=0 // pred_check_branch
    %11 = sbr.rel (0) target = $region9
  $region8: #{la_unisage_forward.13} parent=0 // pred_region
    _
  $region9: #{la_unisage_forward.13} parent=0 // pred_fallthru
    _
  // Predicated region
  $region10: #{la_unisage_forward.13} parent=0 // pred_check
    _
  $region11: #{la_unisage_forward.13} parent=0 // pred_check_branch
    %13 = sbr.rel (0) target = $region13
  $region12: #{la_unisage_forward.13} parent=0 // pred_region
    _
  $region13: #{la_unisage_forward.13} parent=0 // pred_fallthru
    _
  %p15 = scmp.eq.s32.totalorder 0, 0
  // Predicated region
  $region14: #{la_unisage_forward.13} parent=0 // pred_check
    %p16 = pneg %p15
  $region15: #{la_unisage_forward.13} parent=0 // pred_check_branch
    %18 = sbr.rel (%p16) target = $region17
  $region16: #{la_unisage_forward.13} parent=0 // pred_region
    %19 = vst [vmem:[#allocation2] sm:$0xff] 0.0
    %20 = vst [vmem:[#allocation2 + $0x8] sm:$0xff] 0.0
    %21 = vst [vmem:[#allocation2 + $0x10] sm:$0xff] 0.0
    %22 = vst [vmem:[#allocation2 + $0x18] sm:$0xff] 0.0
    %23 = vst [vmem:[#allocation2 + $0x20] sm:$0xff] 0.0
    %24 = vst [vmem:[#allocation2 + $0x28] sm:$0xff] 0.0
    %25 = vst [vmem:[#allocation2 + $0x30] sm:$0xff] 0.0
    %26 = vst [vmem:[#allocation2 + $0x38] sm:$0xff] 0.0
    %27 = vst [vmem:[#allocation2 + $0x40] sm:$0xff] 0.0
    %28 = vst [vmem:[#allocation2 + $0x48] sm:$0xff] 0.0
    %29 = vst [vmem:[#allocation2 + $0x50] sm:$0xff] 0.0
    %30 = vst [vmem:[#allocation2 + $0x58] sm:$0xff] 0.0
    %31 = vst [vmem:[#allocation2 + $0x60] sm:$0xff] 0.0
    %32 = vst [vmem:[#allocation2 + $0x68] sm:$0xff] 0.0
    %33 = vst [vmem:[#allocation2 + $0x70] sm:$0xff] 0.0
    %34 = vst [vmem:[#allocation2 + $0x78] sm:$0xff] 0.0
  $region17: #{la_unisage_forward.13} parent=0 // pred_fallthru
    _
  %v35 = vld [vmem:[#allocation2] sm:$0xff]
  %v36 = vld [vmem:[#allocation2 + $0x8] sm:$0xff]
  %v37 = vld [vmem:[#allocation2 + $0x10] sm:$0xff]
  %v38 = vld [vmem:[#allocation2 + $0x18] sm:$0xff]
  %v39 = vld [vmem:[#allocation2 + $0x20] sm:$0xff]
  %v40 = vld [vmem:[#allocation2 + $0x28] sm:$0xff]
  %v41 = vld [vmem:[#allocation2 + $0x30] sm:$0xff]
  %v42 = vld [vmem:[#allocation2 + $0x38] sm:$0xff]
  %v43 = vld [vmem:[#allocation2 + $0x40] sm:$0xff]
  %v44 = vld [vmem:[#allocation2 + $0x48] sm:$0xff]
  %v45 = vld [vmem:[#allocation2 + $0x50] sm:$0xff]
  %v46 = vld [vmem:[#allocation2 + $0x58] sm:$0xff]
  %v47 = vld [vmem:[#allocation2 + $0x60] sm:$0xff]
  %v48 = vld [vmem:[#allocation2 + $0x68] sm:$0xff]
  %v49 = vld [vmem:[#allocation2 + $0x70] sm:$0xff]
  %v50 = vld [vmem:[#allocation2 + $0x78] sm:$0xff]
  %v51 = vld [vmem:[%s0] sm:$0xf]
  %v52 = vld [vmem:[%s0 + $0x4] sm:$0xf]
  %v53 = vld [vmem:[%s0 + $0x8] sm:$0xf]
  %v54 = vld [vmem:[%s0 + $0xc] sm:$0xf]
  %v55 = vld [vmem:[%s0 + $0x10] sm:$0xf]
  %v56 = vld [vmem:[%s0 + $0x14] sm:$0xf]
  %v57 = vld [vmem:[%s0 + $0x18] sm:$0xf]
  %v58 = vld [vmem:[%s0 + $0x1c] sm:$0xf]
  %v59 = vld [vmem:[%s0 + $0x20] sm:$0xf]
  %v60 = vld [vmem:[%s0 + $0x24] sm:$0xf]
  %v61 = vld [vmem:[%s0 + $0x28] sm:$0xf]
  %v62 = vld [vmem:[%s0 + $0x2c] sm:$0xf]
  %v63 = vld [vmem:[%s0 + $0x30] sm:$0xf]
  %v64 = vld [vmem:[%s0 + $0x34] sm:$0xf]
  %v65 = vld [vmem:[%s0 + $0x38] sm:$0xf]
  %v66 = vld [vmem:[%s0 + $0x3c] sm:$0xf]
  %v67 = vld [vmem:[%s1] sm:$0xf]
  %v68 = vld [vmem:[%s1 + $0x4] sm:$0xf]
  %v69 = vld [vmem:[%s1 + $0x8] sm:$0xf]
  %v70 = vld [vmem:[%s1 + $0xc] sm:$0xf]
  %v71 = vld [vmem:[%s1 + $0x10] sm:$0xf]
  %v72 = vld [vmem:[%s1 + $0x14] sm:$0xf]
  %v73 = vld [vmem:[%s1 + $0x18] sm:$0xf]
  %v74 = vld [vmem:[%s1 + $0x1c] sm:$0xf]
  %v75 = vld [vmem:[%s1 + $0x20] sm:$0xf]
  %v76 = vld [vmem:[%s1 + $0x24] sm:$0xf]
  %v77 = vld [vmem:[%s1 + $0x28] sm:$0xf]
  %v78 = vld [vmem:[%s1 + $0x2c] sm:$0xf]
  %v79 = vld [vmem:[%s1 + $0x30] sm:$0xf]
  %v80 = vld [vmem:[%s1 + $0x34] sm:$0xf]
  %v81 = vld [vmem:[%s1 + $0x38] sm:$0xf]
  %v82 = vld [vmem:[%s1 + $0x3c] sm:$0xf]
  %v99 = vunpack.c.l.b16 %v51
  %v100 = vunpack.c.l.b16 %v52
  %v101 = vunpack.c.l.b16 %v53
  %v102 = vunpack.c.l.b16 %v54
  %v103 = vunpack.c.l.b16 %v55
  %v104 = vunpack.c.l.b16 %v56
  %v105 = vunpack.c.l.b16 %v57
  %v106 = vunpack.c.l.b16 %v58
  %v107 = vunpack.c.l.b16 %v59
  %v108 = vunpack.c.l.b16 %v60
  %v109 = vunpack.c.l.b16 %v61
  %v110 = vunpack.c.l.b16 %v62
  %v111 = vunpack.c.l.b16 %v63
  %v112 = vunpack.c.l.b16 %v64
  %v113 = vunpack.c.l.b16 %v65
  %v114 = vunpack.c.l.b16 %v66
  %v115 = vpack.c.b16 %v100, %v99
  %v116 = vpack.c.b16 %v102, %v101
  %v117 = vpack.c.b16 %v104, %v103
  %v118 = vpack.c.b16 %v106, %v105
  %v119 = vpack.c.b16 %v108, %v107
  %v120 = vpack.c.b16 %v110, %v109
  %v121 = vpack.c.b16 %v112, %v111
  %v122 = vpack.c.b16 %v114, %v113
  %v147 = vunpack.c.l.b16 %v67
  %v148 = vunpack.c.l.b16 %v68
  %v149 = vunpack.c.l.b16 %v69
  %v150 = vunpack.c.l.b16 %v70
  %v151 = vunpack.c.l.b16 %v71
  %v152 = vunpack.c.l.b16 %v72
  %v153 = vunpack.c.l.b16 %v73
  %v154 = vunpack.c.l.b16 %v74
  %v155 = vunpack.c.l.b16 %v75
  %v156 = vunpack.c.l.b16 %v76
  %v157 = vunpack.c.l.b16 %v77
  %v158 = vunpack.c.l.b16 %v78
  %v159 = vunpack.c.l.b16 %v79
  %v160 = vunpack.c.l.b16 %v80
  %v161 = vunpack.c.l.b16 %v81
  %v162 = vunpack.c.l.b16 %v82
  %v163 = vpack.c.b16 %v148, %v147
  %v164 = vpack.c.b16 %v150, %v149
  %v165 = vpack.c.b16 %v152, %v151
  %v166 = vpack.c.b16 %v154, %v153
  %v167 = vpack.c.b16 %v156, %v155
  %v168 = vpack.c.b16 %v158, %v157
  %v169 = vpack.c.b16 %v160, %v159
  %v170 = vpack.c.b16 %v162, %v161
  %179 = vmatprep.subr.bf16.mxu0 0
  %180 = vmatpush1.bf16.msra.mxu0 %v170
  %181 = vmatprep.subr.bf16.mxu0 0
  %182 = vmatpush1.bf16.msra.mxu0 %v169
  %183 = vmatprep.subr.bf16.mxu0 0
  %184 = vmatpush1.bf16.msra.mxu0 %v168
  %185 = vmatprep.subr.bf16.mxu0 0
  %186 = vmatpush1.bf16.msra.mxu0 %v167
  %187 = vmatprep.subr.bf16.mxu0 0
  %188 = vmatpush1.bf16.msra.mxu0 %v166
  %189 = vmatprep.subr.bf16.mxu0 0
  %190 = vmatpush1.bf16.msra.mxu0 %v165
  %191 = vmatprep.subr.bf16.mxu0 0
  %192 = vmatpush1.bf16.msra.mxu0 %v164
  %193 = vmatprep.subr.bf16.mxu0 0
  %194 = vmatpush1.bf16.msra.mxu0 %v163
  %195 = vmatprep.subr.bf16.mxu0 0
  %196 = vmatpush2.bf16.msra.mxu0 0
  %197 = vmatprep.subr.bf16.mxu0 0
  %198 = vmatpush2.bf16.msra.mxu0 0
  %199 = vmatprep.subr.bf16.mxu0 0
  %200 = vmatpush2.bf16.msra.mxu0 0
  %201 = vmatprep.subr.bf16.mxu0 0
  %202 = vmatpush2.bf16.msra.mxu0 0
  %203 = vmatprep.subr.bf16.mxu0 0
  %204 = vmatpush2.bf16.msra.mxu0 0
  %205 = vmatprep.subr.bf16.mxu0 0
  %206 = vmatpush2.bf16.msra.mxu0 0
  %207 = vmatprep.subr.bf16.mxu0 0
  %208 = vmatpush2.bf16.msra.mxu0 0
  %209 = vmatprep.subr.bf16.mxu0 0
  %210 = vmatpush2.bf16.msra.mxu0 0
  %211 = vmatprep.mubr.bf16.mxu0 0
  %212 = vmatmul.mubr.bf16.gmra.mxu0 %v115
  %v213 = vpop.f32.mrf.mxu0
  %v214 = vadd.f32 0.0, %v213
  %v215 = vpop.f32.mrf.mxu0
  %v216 = vpop.f32.mrf.mxu0
  %v217 = vadd.f32 0.0, %v216
  %v218 = vpop.f32.mrf.mxu0
  %219 = vmatprep.mubr.bf16.mxu0 0
  %220 = vmatmul.mubr.bf16.gmra.mxu0 %v116
  %v221 = vpop.f32.mrf.mxu0
  %v222 = vadd.f32 0.0, %v221
  %v223 = vpop.f32.mrf.mxu0
  %v224 = vpop.f32.mrf.mxu0
  %v225 = vadd.f32 0.0, %v224
  %v226 = vpop.f32.mrf.mxu0
  %227 = vmatprep.mubr.bf16.mxu0 0
  %228 = vmatmul.mubr.bf16.gmra.mxu0 %v117
  %v229 = vpop.f32.mrf.mxu0
  %v230 = vadd.f32 0.0, %v229
  %v231 = vpop.f32.mrf.mxu0
  %v232 = vpop.f32.mrf.mxu0
  %v233 = vadd.f32 0.0, %v232
  %v234 = vpop.f32.mrf.mxu0
  %235 = vmatprep.mubr.bf16.mxu0 0
  %236 = vmatmul.mubr.bf16.gmra.mxu0 %v118
  %v237 = vpop.f32.mrf.mxu0
  %v238 = vadd.f32 0.0, %v237
  %v239 = vpop.f32.mrf.mxu0
  %v240 = vpop.f32.mrf.mxu0
  %v241 = vadd.f32 0.0, %v240
  %v242 = vpop.f32.mrf.mxu0
  %243 = vmatprep.mubr.bf16.mxu0 0
  %244 = vmatmul.mubr.bf16.gmra.mxu0 %v119
  %v245 = vpop.f32.mrf.mxu0
  %v246 = vadd.f32 0.0, %v245
  %v247 = vpop.f32.mrf.mxu0
  %v248 = vpop.f32.mrf.mxu0
  %v249 = vadd.f32 0.0, %v248
  %v250 = vpop.f32.mrf.mxu0
  %251 = vmatprep.mubr.bf16.mxu0 0
  %252 = vmatmul.mubr.bf16.gmra.mxu0 %v120
  %v253 = vpop.f32.mrf.mxu0
  %v254 = vadd.f32 0.0, %v253
  %v255 = vpop.f32.mrf.mxu0
  %v256 = vpop.f32.mrf.mxu0
  %v257 = vadd.f32 0.0, %v256
  %v258 = vpop.f32.mrf.mxu0
  %259 = vmatprep.mubr.bf16.mxu0 0
  %260 = vmatmul.mubr.bf16.gmra.mxu0 %v121
  %v261 = vpop.f32.mrf.mxu0
  %v262 = vadd.f32 0.0, %v261
  %v263 = vpop.f32.mrf.mxu0
  %v264 = vpop.f32.mrf.mxu0
  %v265 = vadd.f32 0.0, %v264
  %v266 = vpop.f32.mrf.mxu0
  %267 = vmatprep.mubr.bf16.mxu0 0
  %268 = vmatmul.mubr.bf16.gmra.mxu0 %v122
  %v269 = vpop.f32.mrf.mxu0
  %v270 = vadd.f32 0.0, %v269
  %v271 = vpop.f32.mrf.mxu0
  %v272 = vpop.f32.mrf.mxu0
  %v273 = vadd.f32 0.0, %v272
  %v274 = vpop.f32.mrf.mxu0
  %275 = vdwg.mxu0
  %v276 = vadd.f32 %v35, %v214
  %v277 = vadd.f32 %v36, %v217
  %v278 = vadd.f32 %v37, %v222
  %v279 = vadd.f32 %v38, %v225
  %v280 = vadd.f32 %v39, %v230
  %v281 = vadd.f32 %v40, %v233
  %v282 = vadd.f32 %v41, %v238
  %v283 = vadd.f32 %v42, %v241
  %v284 = vadd.f32 %v43, %v246
  %v285 = vadd.f32 %v44, %v249
  %v286 = vadd.f32 %v45, %v254
  %v287 = vadd.f32 %v46, %v257
  %v288 = vadd.f32 %v47, %v262
  %v289 = vadd.f32 %v48, %v265
  %v290 = vadd.f32 %v49, %v270
  %v291 = vadd.f32 %v50, %v273
  %292 = vst [vmem:[#allocation2] sm:$0xff] %v276
  %293 = vst [vmem:[#allocation2 + $0x8] sm:$0xff] %v277
  %294 = vst [vmem:[#allocation2 + $0x10] sm:$0xff] %v278
  %295 = vst [vmem:[#allocation2 + $0x18] sm:$0xff] %v279
  %296 = vst [vmem:[#allocation2 + $0x20] sm:$0xff] %v280
  %297 = vst [vmem:[#allocation2 + $0x28] sm:$0xff] %v281
  %298 = vst [vmem:[#allocation2 + $0x30] sm:$0xff] %v282
  %299 = vst [vmem:[#allocation2 + $0x38] sm:$0xff] %v283
  %300 = vst [vmem:[#allocation2 + $0x40] sm:$0xff] %v284
  %301 = vst [vmem:[#allocation2 + $0x48] sm:$0xff] %v285
  %302 = vst [vmem:[#allocation2 + $0x50] sm:$0xff] %v286
  %303 = vst [vmem:[#allocation2 + $0x58] sm:$0xff] %v287
  %304 = vst [vmem:[#allocation2 + $0x60] sm:$0xff] %v288
  %305 = vst [vmem:[#allocation2 + $0x68] sm:$0xff] %v289
  %306 = vst [vmem:[#allocation2 + $0x70] sm:$0xff] %v290
  %307 = vst [vmem:[#allocation2 + $0x78] sm:$0xff] %v291
  // Predicated region
  $region18: #{la_unisage_forward.13} parent=0 // pred_check
    %p308 = pneg %p15
  $region19: #{la_unisage_forward.13} parent=0 // pred_check_branch
    %310 = sbr.rel (%p308) target = $region21
  $region20: #{la_unisage_forward.13} parent=0 // pred_region
    %v311 = vld [vmem:[#allocation2] sm:$0xff]
    %v312 = vld [vmem:[#allocation2 + $0x8] sm:$0xff]
    %v313 = vld [vmem:[#allocation2 + $0x10] sm:$0xff]
    %v314 = vld [vmem:[#allocation2 + $0x18] sm:$0xff]
    %v315 = vld [vmem:[#allocation2 + $0x20] sm:$0xff]
    %v316 = vld [vmem:[#allocation2 + $0x28] sm:$0xff]
    %v317 = vld [vmem:[#allocation2 + $0x30] sm:$0xff]
    %v318 = vld [vmem:[#allocation2 + $0x38] sm:$0xff]
    %v319 = vld [vmem:[#allocation2 + $0x40] sm:$0xff]
    %v320 = vld [vmem:[#allocation2 + $0x48] sm:$0xff]
    %v321 = vld [vmem:[#allocation2 + $0x50] sm:$0xff]
    %v322 = vld [vmem:[#allocation2 + $0x58] sm:$0xff]
    %v323 = vld [vmem:[#allocation2 + $0x60] sm:$0xff]
    %v324 = vld [vmem:[#allocation2 + $0x68] sm:$0xff]
    %v325 = vld [vmem:[#allocation2 + $0x70] sm:$0xff]
    %v326 = vld [vmem:[#allocation2 + $0x78] sm:$0xff]
    %v327 = vld [vmem:[%s2] sm:$0xf]
    %v328 = vld [vmem:[%s2 + $0x4] sm:$0xf]
    %v329 = vld [vmem:[%s2 + $0x8] sm:$0xf]
    %v330 = vld [vmem:[%s2 + $0xc] sm:$0xf]
    %v331 = vld [vmem:[%s2 + $0x10] sm:$0xf]
    %v332 = vld [vmem:[%s2 + $0x14] sm:$0xf]
    %v333 = vld [vmem:[%s2 + $0x18] sm:$0xf]
    %v334 = vld [vmem:[%s2 + $0x1c] sm:$0xf]
    %v335 = vld [vmem:[%s2 + $0x20] sm:$0xf]
    %v336 = vld [vmem:[%s2 + $0x24] sm:$0xf]
    %v337 = vld [vmem:[%s2 + $0x28] sm:$0xf]
    %v338 = vld [vmem:[%s2 + $0x2c] sm:$0xf]
    %v339 = vld [vmem:[%s2 + $0x30] sm:$0xf]
    %v340 = vld [vmem:[%s2 + $0x34] sm:$0xf]
    %v341 = vld [vmem:[%s2 + $0x38] sm:$0xf]
    %v342 = vld [vmem:[%s2 + $0x3c] sm:$0xf]
    %v343 = vunpack.c.l.bf16 %v327
    %v344 = vunpack.c.l.bf16 %v328
    %v345 = vunpack.c.l.bf16 %v329
    %v346 = vunpack.c.l.bf16 %v330
    %v347 = vunpack.c.l.bf16 %v331
    %v348 = vunpack.c.l.bf16 %v332
    %v349 = vunpack.c.l.bf16 %v333
    %v350 = vunpack.c.l.bf16 %v334
    %v351 = vunpack.c.l.bf16 %v335
    %v352 = vunpack.c.l.bf16 %v336
    %v353 = vunpack.c.l.bf16 %v337
    %v354 = vunpack.c.l.bf16 %v338
    %v355 = vunpack.c.l.bf16 %v339
    %v356 = vunpack.c.l.bf16 %v340
    %v357 = vunpack.c.l.bf16 %v341
    %v358 = vunpack.c.l.bf16 %v342
    %v359 = vadd.f32 %v311, %v343
    %v360 = vadd.f32 %v312, %v344
    %v361 = vadd.f32 %v313, %v345
    %v362 = vadd.f32 %v314, %v346
    %v363 = vadd.f32 %v315, %v347
    %v364 = vadd.f32 %v316, %v348
    %v365 = vadd.f32 %v317, %v349
    %v366 = vadd.f32 %v318, %v350
    %v367 = vadd.f32 %v319, %v351
    %v368 = vadd.f32 %v320, %v352
    %v369 = vadd.f32 %v321, %v353
    %v370 = vadd.f32 %v322, %v354
    %v371 = vadd.f32 %v323, %v355
    %v372 = vadd.f32 %v324, %v356
    %v373 = vadd.f32 %v325, %v357
    %v374 = vadd.f32 %v326, %v358
    %375 = vst [vmem:[%s3] sm:$0xff] %v359
    %376 = vst [vmem:[%s3 + $0x8] sm:$0xff] %v360
    %377 = vst [vmem:[%s3 + $0x10] sm:$0xff] %v361
    %378 = vst [vmem:[%s3 + $0x18] sm:$0xff] %v362
    %379 = vst [vmem:[%s3 + $0x20] sm:$0xff] %v363
    %380 = vst [vmem:[%s3 + $0x28] sm:$0xff] %v364
    %381 = vst [vmem:[%s3 + $0x30] sm:$0xff] %v365
    %382 = vst [vmem:[%s3 + $0x38] sm:$0xff] %v366
    %383 = vst [vmem:[%s3 + $0x40] sm:$0xff] %v367
    %384 = vst [vmem:[%s3 + $0x48] sm:$0xff] %v368
    %385 = vst [vmem:[%s3 + $0x50] sm:$0xff] %v369
    %386 = vst [vmem:[%s3 + $0x58] sm:$0xff] %v370
    %387 = vst [vmem:[%s3 + $0x60] sm:$0xff] %v371
    %388 = vst [vmem:[%s3 + $0x68] sm:$0xff] %v372
    %389 = vst [vmem:[%s3 + $0x70] sm:$0xff] %v373
    %390 = vst [vmem:[%s3 + $0x78] sm:$0xff] %v374
  $region21: #{la_unisage_forward.13} parent=0 // pred_fallthru
    _
  // Predicated region
  $region22: #{la_unisage_forward.13} parent=0 // pred_check
    _
  $region23: #{la_unisage_forward.13} parent=0 // pred_check_branch
    %392 = sbr.rel (0) target = $region25
  $region24: #{la_unisage_forward.13} parent=0 // pred_region
    _
  $region25: #{la_unisage_forward.13} parent=0 // pred_fallthru
    _
  // Predicated region
  $region26: #{la_unisage_forward.13} parent=0 // pred_check
    _
  $region27: #{la_unisage_forward.13} parent=0 // pred_check_branch
    %394 = sbr.rel (0) target = $region29
  $region28: #{la_unisage_forward.13} parent=0 // pred_region
    _
  $region29: #{la_unisage_forward.13} parent=0 // pred_fallthru
    _

</llo_original>
